<compile_context>
chip_gen: v6e
topology: v6e:2x2x1
jax: 0.10.0
libtpu: 0.0.40
codegen_flags: <defaults>
</compile_context>

<pallas_src>
import functools

import jax
import jax.numpy as jnp
from jax.experimental import pallas as pl
from jax.experimental.pallas import tpu as pltpu


LANE = 128

# (name, Cin, Cout, K, stride, pad) -- static config (kept out of the jitted pytree)
CONV_CFG = (
    ("conv1", 3, 8, 7, 2, 3),
    ("conv2", 8, 16, 3, 1, 1),
    ("conv3", 16, 24, 3, 2, 1),
    ("conv4", 24, 32, 3, 2, 1),
    ("conv5", 32, 32, 1, 1, 0),
)
FEAT_DIM, NUM_OUT = 32, 16


# ----------------------------------------------------------------------------
# Small static helpers
# ----------------------------------------------------------------------------
def _round_up(v, m):
    return ((v + m - 1) // m) * m


def _pick_row_tile(m):
    """Pad a row count to a sublane-friendly size and pick a row tile."""
    mp = _round_up(m, 8)
    if mp >= 512:
        mp = _round_up(mp, 256)
        return mp, 256          # 2+ parallel row blocks (v6e/v7x MXU + 2nd TC)
    if mp >= 128:
        mp = _round_up(mp, 128)
        return mp, 128
    return mp, mp


def _pick_k_tile(k_pad):
    if k_pad <= 512:
        return k_pad            # single K step -> no-accumulator fast path
    for cand in (512, 384, 256, 128):
        if k_pad % cand == 0:
            return cand
    return 128


# ----------------------------------------------------------------------------
# Pallas kernels
# ----------------------------------------------------------------------------
def _matmul_bias_act_single_kernel(x_ref, w_ref, b_ref, o_ref, *, relu):
    # Single-K fast path: no scratch accumulator, no revisit.
    acc = jnp.dot(x_ref[...], w_ref[...], preferred_element_type=jnp.float32)
    acc = acc + b_ref[...]                    # (1, tn) broadcasts over rows
    if relu:
        acc = jnp.maximum(acc, 0.0)
    o_ref[...] = acc.astype(o_ref.dtype)


def _matmul_bias_act_kernel(x_ref, w_ref, b_ref, o_ref, acc_ref, *, relu):
    k = pl.program_id(2)

    @pl.when(k == 0)
    def _():
        acc_ref[...] = jnp.zeros_like(acc_ref)

    acc_ref[...] += jnp.dot(x_ref[...], w_ref[...],
                            preferred_element_type=jnp.float32)

    @pl.when(k == pl.num_programs(2) - 1)
    def _():
        acc = acc_ref[...] + b_ref[...]
        if relu:
            acc = jnp.maximum(acc, 0.0)
        o_ref[...] = acc.astype(o_ref.dtype)


def _maxpool_kernel(p_ref, o_ref):
    # p_ref: (P, tm, C) stacked window patches; elementwise max over windows.
    o_ref[...] = jnp.max(p_ref[...], axis=0)


def _conv5_pool_fc_kernel(x_ref, w5_ref, b5_ref, pool_ref, wfc_ref, bfc_ref,
                          o_ref):
    # Fused conv5 (1x1) + ReLU + global avgpool + fc, all VMEM-resident.
    h = jnp.dot(x_ref[...], w5_ref[...],
                preferred_element_type=jnp.float32)          # (N*HW, 128)
    h = jnp.maximum(h + b5_ref[...], 0.0)
    # Mean over HW via a tiny pooling-matrix matmul (avoids in-kernel reshape).
    v = jnp.dot(pool_ref[...], h,
                preferred_element_type=jnp.float32)          # (N, 128)
    out = jnp.dot(v, wfc_ref[...],
                  preferred_element_type=jnp.float32) + bfc_ref[...]
    o_ref[...] = out.astype(o_ref.dtype)


# ----------------------------------------------------------------------------
# Pallas wrappers
# ----------------------------------------------------------------------------
def matmul_bias_act(x, w, b, relu):
    """x: (M,K) bf16, w: (K,N) bf16, b: (1,N) f32 -> (M,N) bf16.

    M % 8 == 0, K % 128 == 0, N % 128 == 0 (caller pads).
    """
    M, K = x.shape
    K2, N = w.shape
    assert K == K2 and M % 8 == 0 and K % LANE == 0 and N % LANE == 0
    _, tm = _pick_row_tile(M)
    assert M % tm == 0
    tn = LANE
    tk = _pick_k_tile(K)
    kgrid = K // tk

    if kgrid == 1:
        return pl.pallas_call(
            functools.partial(_matmul_bias_act_single_kernel, relu=relu),
            grid=(M // tm, N // tn),
            in_specs=[
                pl.BlockSpec((tm, K), lambda i, j: (i, 0)),
                pl.BlockSpec((K, tn), lambda i, j: (0, j)),
                pl.BlockSpec((1, tn), lambda i, j: (0, j)),
            ],
            out_specs=pl.BlockSpec((tm, tn), lambda i, j: (i, j)),
            out_shape=jax.ShapeDtypeStruct((M, N), jnp.bfloat16),
            compiler_params=pltpu.CompilerParams(
                dimension_semantics=("parallel", "parallel"),
                vmem_limit_bytes=32 * 1024 * 1024,
            ),
        )(x, w, b)

    return pl.pallas_call(
        functools.partial(_matmul_bias_act_kernel, relu=relu),
        grid=(M // tm, N // tn, kgrid),
        in_specs=[
            pl.BlockSpec((tm, tk), lambda i, j, k: (i, k)),
            pl.BlockSpec((tk, tn), lambda i, j, k: (k, j)),
            # Bias tile is independent of k -> stays resident across the K axis.
            pl.BlockSpec((1, tn), lambda i, j, k: (0, j)),
        ],
        out_specs=pl.BlockSpec((tm, tn), lambda i, j, k: (i, j)),
        out_shape=jax.ShapeDtypeStruct((M, N), jnp.bfloat16),
        scratch_shapes=[pltpu.VMEM((tm, tn), jnp.float32)],
        compiler_params=pltpu.CompilerParams(
            dimension_semantics=("parallel", "parallel", "arbitrary"),
            vmem_limit_bytes=32 * 1024 * 1024,
        ),
    )(x, w, b)


def conv2d_relu(x_nhwc, wm, bp, cin, ksize, stride, pad):
    """Conv2d + bias + ReLU on NHWC input with prepped weights.

    wm: (K_pad, 128) bf16 with K = ksize*ksize*cin densely packed then padded.
    bp: (1, 128) f32 (padded bias lanes are zero -> padded output lanes stay 0).
    Input channel dim may be 128-lane padded; only the first `cin` real
    channels enter the im2col (dense-K packing).
    """
    N, H, W, Cc = x_nhwc.shape
    assert Cc >= cin
    Ho = (H + 2 * pad - ksize) // stride + 1
    Wo = (W + 2 * pad - ksize) // stride + 1

    xr = x_nhwc[..., :cin]                              # real channels only
    xp = jnp.pad(xr, ((0, 0), (pad, pad), (pad, pad), (0, 0)))
    patches = []
    for kh in range(ksize):
        for kw in range(ksize):
            patches.append(
                xp[:,
                   kh:kh + (Ho - 1) * stride + 1:stride,
                   kw:kw + (Wo - 1) * stride + 1:stride,
                   :])
    # (N, Ho, Wo, KH*KW*cin), element order ((kh*KW + kw)*cin + c)
    patches = jnp.concatenate(patches, axis=-1)

    M = N * Ho * Wo
    K = ksize * ksize * cin
    K_pad, N_pad = wm.shape
    assert K_pad >= K and N_pad == LANE
    M_pad, _ = _pick_row_tile(M)

    pm = patches.reshape(M, K)
    pm = jnp.pad(pm, ((0, M_pad - M), (0, K_pad - K))).astype(jnp.bfloat16)

    y = matmul_bias_act(pm, wm, bp, relu=True)          # (M_pad, 128) bf16
    return y[:M].reshape(N, Ho, Wo, N_pad)


def maxpool2d(x_nhwc, ksize=3, stride=2, pad=1):
    # TODO(synk): read the padded NHWC tensor in-kernel (strided slices) instead
    #             of materializing the stacked (9, M, C) patch tensor.
    N, H, W, C = x_nhwc.shape
    Ho = (H + 2 * pad - ksize) // stride + 1
    Wo = (W + 2 * pad - ksize) // stride + 1
    xp = jnp.pad(x_nhwc, ((0, 0), (pad, pad), (pad, pad), (0, 0)),
                 constant_values=-jnp.inf)
    patches = []
    for kh in range(ksize):
        for kw in range(ksize):
            patches.append(
                xp[:,
                   kh:kh + (Ho - 1) * stride + 1:stride,
                   kw:kw + (Wo - 1) * stride + 1:stride,
                   :])
    P = ksize * ksize
    M = N * Ho * Wo
    M_pad, tm = _pick_row_tile(M)
    p = jnp.stack(patches, axis=0).reshape(P, M, C)
    p = jnp.pad(p, ((0, 0), (0, M_pad - M), (0, 0)))    # pad rows (discarded)

    out = pl.pallas_call(
        _maxpool_kernel,
        grid=(M_pad // tm,),
        in_specs=[pl.BlockSpec((P, tm, C), lambda i: (0, i, 0))],
        out_specs=pl.BlockSpec((tm, C), lambda i: (i, 0)),
        out_shape=jax.ShapeDtypeStruct((M_pad, C), x_nhwc.dtype),
        compiler_params=pltpu.CompilerParams(
            dimension_semantics=("parallel",)),
    )(p)
    return out[:M].reshape(N, Ho, Wo, C)


def conv5_pool_fc(x_flat, n, hw, tail):
    """Fused conv5(1x1) + ReLU + AdaptiveAvgPool2d(1) + flatten + Linear.

    x_flat: (n*hw, 128) bf16 (conv4 output, lane-dense, row order n*hw + s).
    """
    M = n * hw
    # Pooling matrix: pool[i, i*hw:(i+1)*hw] = 1/hw  (constant-folded under jit)
    pool = jnp.repeat(jnp.eye(n, dtype=jnp.float32), hw, axis=1) * (1.0 / hw)

    out = pl.pallas_call(
        _conv5_pool_fc_kernel,
        grid=(1,),
        in_specs=[
            pl.BlockSpec((M, LANE), lambda i: (0, 0)),
            pl.BlockSpec((LANE, LANE), lambda i: (0, 0)),
            pl.BlockSpec((1, LANE), lambda i: (0, 0)),
            pl.BlockSpec((n, M), lambda i: (0, 0)),
            pl.BlockSpec((LANE, LANE), lambda i: (0, 0)),
            pl.BlockSpec((1, LANE), lambda i: (0, 0)),
        ],
        out_specs=pl.BlockSpec((n, LANE), lambda i: (0, 0)),
        out_shape=jax.ShapeDtypeStruct((n, LANE), jnp.float32),
        compiler_params=pltpu.CompilerParams(
            dimension_semantics=("arbitrary",),
            vmem_limit_bytes=32 * 1024 * 1024,
        ),
    )(x_flat, tail["w5"], tail["b5"], pool, tail["wfc"], tail["bfc"])
    return out[:, :NUM_OUT]


# ----------------------------------------------------------------------------
# Model: deterministic parameter construction + prep + forward
# ----------------------------------------------------------------------------
def init_params(key):
    params = {}
    for name, cin, cout, k, _s, _p in CONV_CFG:
        key, kw_, kb_ = jax.random.split(key, 3)
        params[name] = {
            "w": 0.1 * jax.random.normal(kw_, (cout, cin, k, k), jnp.float32),
            "b": 0.1 * jax.random.normal(kb_, (cout,), jnp.float32),
        }
    key, kw_, kb_ = jax.random.split(key, 3)
    params["fc"] = {
        "w": 0.1 * jax.random.normal(kw_, (NUM_OUT, FEAT_DIM), jnp.float32),
        "b": 0.1 * jax.random.normal(kb_, (NUM_OUT,), jnp.float32),
    }
    return params


def prepare_params(params):
    """One-time weight/bias transforms (kept out of the jitted forward)."""
    prep = {"convs": []}
    for name, cin, cout, k, _s, _p in CONV_CFG[:-1]:          # conv1..conv4
        w = params[name]["w"]                                 # (cout,cin,k,k)
        b = params[name]["b"]
        K = k * k * cin
        K_pad = _round_up(K, LANE)
        # (kh, kw, cin, cout) reshape matches the im2col element order.
        wm = jnp.transpose(w, (2, 3, 1, 0)).reshape(K, cout)
        wm = jnp.pad(wm, ((0, K_pad - K), (0, LANE - cout))).astype(jnp.bfloat16)
        bp = jnp.pad(b, (0, LANE - cout)).astype(jnp.float32).reshape(1, LANE)
        prep["convs"].append({"w": wm, "b": bp})

    # conv5 (1x1) + fc for the fused tail kernel.
    _n5, cin5, cout5, _k5, _s5, _p5 = CONV_CFG[-1]
    w5 = params["conv5"]["w"].reshape(cout5, cin5)            # 1x1 kernel
    w5m = jnp.pad(w5.T, ((0, LANE - cin5),
                         (0, LANE - cout5))).astype(jnp.bfloat16)
    b5p = jnp.pad(params["conv5"]["b"],
                  (0, LANE - cout5)).astype(jnp.float32).reshape(1, LANE)
    wfc = jnp.pad(params["fc"]["w"].T,
                  ((0, LANE - FEAT_DIM),
                   (0, LANE - NUM_OUT))).astype(jnp.float32)
    bfc = jnp.pad(params["fc"]["b"],
                  (0, LANE - NUM_OUT)).astype(jnp.float32).reshape(1, LANE)
    prep["tail"] = {"w5": w5m, "b5": b5p, "wfc": wfc, "bfc": bfc}
    return prep


def osnet_reid_forward(prep, x_nchw):
    # Host-facing layout is NCHW (PyTorch); internally NHWC (channels on lanes).
    x = jnp.transpose(x_nchw, (0, 2, 3, 1))

    # conv1
    _n, cin, _co, k, s, p = CONV_CFG[0]
    x = conv2d_relu(x, prep["convs"][0]["w"], prep["convs"][0]["b"],
                    cin, k, s, p)

    # maxpool
    x = maxpool2d(x, ksize=3, stride=2, pad=1)

    # conv2 .. conv4
    for idx in (1, 2, 3):
        _n, cin, _co, k, s, p = CONV_CFG[idx]
        x = conv2d_relu(x, prep["convs"][idx]["w"], prep["convs"][idx]["b"],
                        cin, k, s, p)

    # conv5 + global_avgpool + flatten + fc   (one fused Pallas kernel)
    N, H, W, C = x.shape
    return conv5_pool_fc(x.reshape(N * H * W, C), N, H * W, prep["tail"])


if __name__ == "__main__":
    key = jax.random.PRNGKey(0)
    key, kx = jax.random.split(key)
    # Small RGB-like input, PyTorch NCHW convention.
    x = jax.random.normal(kx, (2, 3, 32, 32), jnp.float32)
    params = init_params(key)
    prep = prepare_params(params)          # one-time, outside the jit

    fwd = jax.jit(osnet_reid_forward)
    out = fwd(prep, x)
    out = jax.block_until_ready(out)
    assert out.shape == (2, NUM_OUT)
    assert bool(jnp.all(jnp.isfinite(out)))
    print("KERNEL_OK")
</pallas_src>

<mosaic_0001>
module attributes {stable_mosaic.version = 11 : i64} {
  func.func @_matmul_bias_act_single_kernel(%arg0: i32, %arg1: i32, %arg2: memref<256x256xbf16, #tpu.memory_space<vmem>>, %arg3: memref<256x128xbf16, #tpu.memory_space<vmem>>, %arg4: memref<1x128xf32, #tpu.memory_space<vmem>>, %arg5: memref<256x128xbf16, #tpu.memory_space<vmem>>) attributes {dimension_semantics = [#tpu.dimension_semantics<parallel>, #tpu.dimension_semantics<parallel>], iteration_bounds = array<i64: 2, 1>, scalar_prefetch = 0 : i64, scratch_operands = 0 : i64, tpu.core_type = #tpu.core_type<tc>, window_params = [{transform_indices = @transform_0, window_bounds = array<i64: 256, 256>}, {transform_indices = @transform_1, window_bounds = array<i64: 256, 128>}, {transform_indices = @transform_2, window_bounds = array<i64: 1, 128>}, {transform_indices = @transform_3, window_bounds = array<i64: 256, 128>}]} {
    %c0 = arith.constant 0 : index
    %c0_0 = arith.constant 0 : index
    %0 = vector.load %arg2[%c0, %c0_0] : memref<256x256xbf16, #tpu.memory_space<vmem>>, vector<256x256xbf16>
    %c0_1 = arith.constant 0 : index
    %c0_2 = arith.constant 0 : index
    %1 = vector.load %arg3[%c0_1, %c0_2] : memref<256x128xbf16, #tpu.memory_space<vmem>>, vector<256x128xbf16>
    %cst = arith.constant dense<0.000000e+00> : vector<256x128xf32>
    %2 = tpu.matmul %0, %1, %cst {dimension_numbers = #tpu.dot_dimension_numbers<[1], [0], [0], [1], [0, 0, 1, 1], [], []>} : vector<256x256xbf16>, vector<256x128xbf16>, vector<256x128xf32> -> vector<256x128xf32>
    %c0_3 = arith.constant 0 : index
    %c0_4 = arith.constant 0 : index
    %3 = vector.load %arg4[%c0_3, %c0_4] : memref<1x128xf32, #tpu.memory_space<vmem>>, vector<1x128xf32>
    %4 = vector.broadcast %3 : vector<1x128xf32> to vector<256x128xf32>
    %5 = arith.addf %2, %4 : vector<256x128xf32>
    %cst_5 = arith.constant 0.000000e+00 : f32
    %6 = vector.broadcast %cst_5 : f32 to vector<256x128xf32>
    %7 = arith.maximumf %5, %6 : vector<256x128xf32>
    %8 = arith.truncf %7 : vector<256x128xf32> to vector<256x128xbf16>
    %c0_6 = arith.constant 0 : index
    %c0_7 = arith.constant 0 : index
    %9 = vector.load %arg5[%c0_6, %c0_7] : memref<256x128xbf16, #tpu.memory_space<vmem>>, vector<256x128xbf16>
    tpu.vector_store %arg5[%c0_6, %c0_7], %8 {strides = array<i32>} : memref<256x128xbf16, #tpu.memory_space<vmem>>, vector<256x128xbf16>,
    return
  }
  func.func @transform_0(%arg0: i32, %arg1: i32) -> (i32, i32) {
    %c0_i32 = arith.constant 0 : i32
    %c0_i32_0 = arith.constant 0 : i32
    return %arg0, %c0_i32 : i32, i32
  }
  func.func @transform_1(%arg0: i32, %arg1: i32) -> (i32, i32) {
    %c0_i32 = arith.constant 0 : i32
    %c0_i32_0 = arith.constant 0 : i32
    return %c0_i32, %arg1 : i32, i32
  }
  func.func @transform_2(%arg0: i32, %arg1: i32) -> (i32, i32) {
    %c0_i32 = arith.constant 0 : i32
    %c0_i32_0 = arith.constant 0 : i32
    return %c0_i32, %arg1 : i32, i32
  }
  func.func @transform_3(%arg0: i32, %arg1: i32) -> (i32, i32) {
    %c0_i32 = arith.constant 0 : i32
    return %arg0, %arg1 : i32, i32
  }
}

module attributes {stable_mosaic.version = 11 : i64} {
  func.func @_maxpool_kernel(%arg0: i32, %arg1: memref<9x128x128xbf16, #tpu.memory_space<vmem>>, %arg2: memref<128x128xbf16, #tpu.memory_space<vmem>>) attributes {dimension_semantics = [#tpu.dimension_semantics<parallel>], iteration_bounds = array<i64: 1>, scalar_prefetch = 0 : i64, scratch_operands = 0 : i64, tpu.core_type = #tpu.core_type<tc>, window_params = [{transform_indices = @transform_0, window_bounds = array<i64: 9, 128, 128>}, {transform_indices = @transform_1, window_bounds = array<i64: 128, 128>}]} {
    %c0 = arith.constant 0 : index
    %c0_0 = arith.constant 0 : index
    %c0_1 = arith.constant 0 : index
    %0 = vector.load %arg1[%c0, %c0_0, %c0_1] : memref<9x128x128xbf16, #tpu.memory_space<vmem>>, vector<9x128x128xbf16>
    %cst = arith.constant dense<0xFF80> : vector<128x128xbf16>
    %1 = vector.multi_reduction <maximumf>, %0, %cst [0] : vector<9x128x128xbf16> to vector<128x128xbf16>
    %c0_2 = arith.constant 0 : index
    %c0_3 = arith.constant 0 : index
    %2 = vector.load %arg2[%c0_2, %c0_3] : memref<128x128xbf16, #tpu.memory_space<vmem>>, vector<128x128xbf16>
    tpu.vector_store %arg2[%c0_2, %c0_3], %1 {strides = array<i32>} : memref<128x128xbf16, #tpu.memory_space<vmem>>, vector<128x128xbf16>,
    return
  }
  func.func @transform_0(%arg0: i32) -> (i32, i32, i32) {
    %c0_i32 = arith.constant 0 : i32
    %c0_i32_0 = arith.constant 0 : i32
    %c0_i32_1 = arith.constant 0 : i32
    return %c0_i32, %arg0, %c0_i32_0 : i32, i32, i32
  }
  func.func @transform_1(%arg0: i32) -> (i32, i32) {
    %c0_i32 = arith.constant 0 : i32
    %c0_i32_0 = arith.constant 0 : i32
    return %arg0, %c0_i32 : i32, i32
  }
}

module attributes {stable_mosaic.version = 11 : i64} {
  func.func @_matmul_bias_act_single_kernel(%arg0: i32, %arg1: i32, %arg2: memref<128x128xbf16, #tpu.memory_space<vmem>>, %arg3: memref<128x128xbf16, #tpu.memory_space<vmem>>, %arg4: memref<1x128xf32, #tpu.memory_space<vmem>>, %arg5: memref<128x128xbf16, #tpu.memory_space<vmem>>) attributes {dimension_semantics = [#tpu.dimension_semantics<parallel>, #tpu.dimension_semantics<parallel>], iteration_bounds = array<i64: 1, 1>, scalar_prefetch = 0 : i64, scratch_operands = 0 : i64, tpu.core_type = #tpu.core_type<tc>, window_params = [{transform_indices = @transform_0, window_bounds = array<i64: 128, 128>}, {transform_indices = @transform_1, window_bounds = array<i64: 128, 128>}, {transform_indices = @transform_2, window_bounds = array<i64: 1, 128>}, {transform_indices = @transform_3, window_bounds = array<i64: 128, 128>}]} {
    %c0 = arith.constant 0 : index
    %c0_0 = arith.constant 0 : index
    %0 = vector.load %arg2[%c0, %c0_0] : memref<128x128xbf16, #tpu.memory_space<vmem>>, vector<128x128xbf16>
    %c0_1 = arith.constant 0 : index
    %c0_2 = arith.constant 0 : index
    %1 = vector.load %arg3[%c0_1, %c0_2] : memref<128x128xbf16, #tpu.memory_space<vmem>>, vector<128x128xbf16>
    %cst = arith.constant dense<0.000000e+00> : vector<128x128xf32>
    %2 = tpu.matmul %0, %1, %cst {dimension_numbers = #tpu.dot_dimension_numbers<[1], [0], [0], [1], [0, 0, 1, 1], [], []>} : vector<128x128xbf16>, vector<128x128xbf16>, vector<128x128xf32> -> vector<128x128xf32>
    %c0_3 = arith.constant 0 : index
    %c0_4 = arith.constant 0 : index
    %3 = vector.load %arg4[%c0_3, %c0_4] : memref<1x128xf32, #tpu.memory_space<vmem>>, vector<1x128xf32>
    %4 = vector.broadcast %3 : vector<1x128xf32> to vector<128x128xf32>
    %5 = arith.addf %2, %4 : vector<128x128xf32>
    %cst_5 = arith.constant 0.000000e+00 : f32
    %6 = vector.broadcast %cst_5 : f32 to vector<128x128xf32>
    %7 = arith.maximumf %5, %6 : vector<128x128xf32>
    %8 = arith.truncf %7 : vector<128x128xf32> to vector<128x128xbf16>
    %c0_6 = arith.constant 0 : index
    %c0_7 = arith.constant 0 : index
    %9 = vector.load %arg5[%c0_6, %c0_7] : memref<128x128xbf16, #tpu.memory_space<vmem>>, vector<128x128xbf16>
    tpu.vector_store %arg5[%c0_6, %c0_7], %8 {strides = array<i32>} : memref<128x128xbf16, #tpu.memory_space<vmem>>, vector<128x128xbf16>,
    return
  }
  func.func @transform_0(%arg0: i32, %arg1: i32) -> (i32, i32) {
    %c0_i32 = arith.constant 0 : i32
    %c0_i32_0 = arith.constant 0 : i32
    return %arg0, %c0_i32 : i32, i32
  }
  func.func @transform_1(%arg0: i32, %arg1: i32) -> (i32, i32) {
    %c0_i32 = arith.constant 0 : i32
    %c0_i32_0 = arith.constant 0 : i32
    return %c0_i32, %arg1 : i32, i32
  }
  func.func @transform_2(%arg0: i32, %arg1: i32) -> (i32, i32) {
    %c0_i32 = arith.constant 0 : i32
    %c0_i32_0 = arith.constant 0 : i32
    return %c0_i32, %arg1 : i32, i32
  }
  func.func @transform_3(%arg0: i32, %arg1: i32) -> (i32, i32) {
    %c0_i32 = arith.constant 0 : i32
    return %arg0, %arg1 : i32, i32
  }
}

module attributes {stable_mosaic.version = 11 : i64} {
  func.func @_matmul_bias_act_single_kernel(%arg0: i32, %arg1: i32, %arg2: memref<32x256xbf16, #tpu.memory_space<vmem>>, %arg3: memref<256x128xbf16, #tpu.memory_space<vmem>>, %arg4: memref<1x128xf32, #tpu.memory_space<vmem>>, %arg5: memref<32x128xbf16, #tpu.memory_space<vmem>>) attributes {dimension_semantics = [#tpu.dimension_semantics<parallel>, #tpu.dimension_semantics<parallel>], iteration_bounds = array<i64: 1, 1>, scalar_prefetch = 0 : i64, scratch_operands = 0 : i64, tpu.core_type = #tpu.core_type<tc>, window_params = [{transform_indices = @transform_0, window_bounds = array<i64: 32, 256>}, {transform_indices = @transform_1, window_bounds = array<i64: 256, 128>}, {transform_indices = @transform_2, window_bounds = array<i64: 1, 128>}, {transform_indices = @transform_3, window_bounds = array<i64: 32, 128>}]} {
    %c0 = arith.constant 0 : index
    %c0_0 = arith.constant 0 : index
    %0 = vector.load %arg2[%c0, %c0_0] : memref<32x256xbf16, #tpu.memory_space<vmem>>, vector<32x256xbf16>
    %c0_1 = arith.constant 0 : index
    %c0_2 = arith.constant 0 : index
    %1 = vector.load %arg3[%c0_1, %c0_2] : memref<256x128xbf16, #tpu.memory_space<vmem>>, vector<256x128xbf16>
    %cst = arith.constant dense<0.000000e+00> : vector<32x128xf32>
    %2 = tpu.matmul %0, %1, %cst {dimension_numbers = #tpu.dot_dimension_numbers<[1], [0], [0], [1], [0, 0, 1, 1], [], []>} : vector<32x256xbf16>, vector<256x128xbf16>, vector<32x128xf32> -> vector<32x128xf32>
    %c0_3 = arith.constant 0 : index
    %c0_4 = arith.constant 0 : index
    %3 = vector.load %arg4[%c0_3, %c0_4] : memref<1x128xf32, #tpu.memory_space<vmem>>, vector<1x128xf32>
    %4 = vector.broadcast %3 : vector<1x128xf32> to vector<32x128xf32>
    %5 = arith.addf %2, %4 : vector<32x128xf32>
    %cst_5 = arith.constant 0.000000e+00 : f32
    %6 = vector.broadcast %cst_5 : f32 to vector<32x128xf32>
    %7 = arith.maximumf %5, %6 : vector<32x128xf32>
    %8 = arith.truncf %7 : vector<32x128xf32> to vector<32x128xbf16>
    %c0_6 = arith.constant 0 : index
    %c0_7 = arith.constant 0 : index
    %9 = vector.load %arg5[%c0_6, %c0_7] : memref<32x128xbf16, #tpu.memory_space<vmem>>, vector<32x128xbf16>
    tpu.vector_store %arg5[%c0_6, %c0_7], %8 {strides = array<i32>} : memref<32x128xbf16, #tpu.memory_space<vmem>>, vector<32x128xbf16>,
    return
  }
  func.func @transform_0(%arg0: i32, %arg1: i32) -> (i32, i32) {
    %c0_i32 = arith.constant 0 : i32
    %c0_i32_0 = arith.constant 0 : i32
    return %arg0, %c0_i32 : i32, i32
  }
  func.func @transform_1(%arg0: i32, %arg1: i32) -> (i32, i32) {
    %c0_i32 = arith.constant 0 : i32
    %c0_i32_0 = arith.constant 0 : i32
    return %c0_i32, %arg1 : i32, i32
  }
  func.func @transform_2(%arg0: i32, %arg1: i32) -> (i32, i32) {
    %c0_i32 = arith.constant 0 : i32
    %c0_i32_0 = arith.constant 0 : i32
    return %c0_i32, %arg1 : i32, i32
  }
  func.func @transform_3(%arg0: i32, %arg1: i32) -> (i32, i32) {
    %c0_i32 = arith.constant 0 : i32
    return %arg0, %arg1 : i32, i32
  }
}

module attributes {stable_mosaic.version = 11 : i64} {
  func.func @_matmul_bias_act_single_kernel(%arg0: i32, %arg1: i32, %arg2: memref<8x256xbf16, #tpu.memory_space<vmem>>, %arg3: memref<256x128xbf16, #tpu.memory_space<vmem>>, %arg4: memref<1x128xf32, #tpu.memory_space<vmem>>, %arg5: memref<8x128xbf16, #tpu.memory_space<vmem>>) attributes {dimension_semantics = [#tpu.dimension_semantics<parallel>, #tpu.dimension_semantics<parallel>], iteration_bounds = array<i64: 1, 1>, scalar_prefetch = 0 : i64, scratch_operands = 0 : i64, tpu.core_type = #tpu.core_type<tc>, window_params = [{transform_indices = @transform_0, window_bounds = array<i64: 8, 256>}, {transform_indices = @transform_1, window_bounds = array<i64: 256, 128>}, {transform_indices = @transform_2, window_bounds = array<i64: 1, 128>}, {transform_indices = @transform_3, window_bounds = array<i64: 8, 128>}]} {
    %c0 = arith.constant 0 : index
    %c0_0 = arith.constant 0 : index
    %0 = vector.load %arg2[%c0, %c0_0] : memref<8x256xbf16, #tpu.memory_space<vmem>>, vector<8x256xbf16>
    %c0_1 = arith.constant 0 : index
    %c0_2 = arith.constant 0 : index
    %1 = vector.load %arg3[%c0_1, %c0_2] : memref<256x128xbf16, #tpu.memory_space<vmem>>, vector<256x128xbf16>
    %cst = arith.constant dense<0.000000e+00> : vector<8x128xf32>
    %2 = tpu.matmul %0, %1, %cst {dimension_numbers = #tpu.dot_dimension_numbers<[1], [0], [0], [1], [0, 0, 1, 1], [], []>} : vector<8x256xbf16>, vector<256x128xbf16>, vector<8x128xf32> -> vector<8x128xf32>
    %c0_3 = arith.constant 0 : index
    %c0_4 = arith.constant 0 : index
    %3 = vector.load %arg4[%c0_3, %c0_4] : memref<1x128xf32, #tpu.memory_space<vmem>>, vector<1x128xf32>
    %4 = vector.broadcast %3 : vector<1x128xf32> to vector<8x128xf32>
    %5 = arith.addf %2, %4 : vector<8x128xf32>
    %cst_5 = arith.constant 0.000000e+00 : f32
    %6 = vector.broadcast %cst_5 : f32 to vector<8x128xf32>
    %7 = arith.maximumf %5, %6 : vector<8x128xf32>
    %8 = arith.truncf %7 : vector<8x128xf32> to vector<8x128xbf16>
    %c0_6 = arith.constant 0 : index
    %c0_7 = arith.constant 0 : index
    %9 = vector.load %arg5[%c0_6, %c0_7] : memref<8x128xbf16, #tpu.memory_space<vmem>>, vector<8x128xbf16>
    tpu.vector_store %arg5[%c0_6, %c0_7], %8 {strides = array<i32>} : memref<8x128xbf16, #tpu.memory_space<vmem>>, vector<8x128xbf16>,
    return
  }
  func.func @transform_0(%arg0: i32, %arg1: i32) -> (i32, i32) {
    %c0_i32 = arith.constant 0 : i32
    %c0_i32_0 = arith.constant 0 : i32
    return %arg0, %c0_i32 : i32, i32
  }
  func.func @transform_1(%arg0: i32, %arg1: i32) -> (i32, i32) {
    %c0_i32 = arith.constant 0 : i32
    %c0_i32_0 = arith.constant 0 : i32
    return %c0_i32, %arg1 : i32, i32
  }
  func.func @transform_2(%arg0: i32, %arg1: i32) -> (i32, i32) {
    %c0_i32 = arith.constant 0 : i32
    %c0_i32_0 = arith.constant 0 : i32
    return %c0_i32, %arg1 : i32, i32
  }
  func.func @transform_3(%arg0: i32, %arg1: i32) -> (i32, i32) {
    %c0_i32 = arith.constant 0 : i32
    return %arg0, %arg1 : i32, i32
  }
}

module attributes {stable_mosaic.version = 11 : i64} {
  func.func @_conv5_pool_fc_kernel(%arg0: i32, %arg1: memref<8x128xbf16, #tpu.memory_space<vmem>>, %arg2: memref<128x128xbf16, #tpu.memory_space<vmem>>, %arg3: memref<1x128xf32, #tpu.memory_space<vmem>>, %arg4: memref<2x8xf32, #tpu.memory_space<vmem>>, %arg5: memref<128x128xf32, #tpu.memory_space<vmem>>, %arg6: memref<1x128xf32, #tpu.memory_space<vmem>>, %arg7: memref<2x128xf32, #tpu.memory_space<vmem>>) attributes {dimension_semantics = [#tpu.dimension_semantics<arbitrary>], iteration_bounds = array<i64: 1>, scalar_prefetch = 0 : i64, scratch_operands = 0 : i64, tpu.core_type = #tpu.core_type<tc>, window_params = [{pipeline_mode = #tpu.pipeline_mode<synchronous>, transform_indices = @transform_0, window_bounds = array<i64: 8, 128>}, {pipeline_mode = #tpu.pipeline_mode<synchronous>, transform_indices = @transform_1, window_bounds = array<i64: 128, 128>}, {pipeline_mode = #tpu.pipeline_mode<synchronous>, transform_indices = @transform_2, window_bounds = array<i64: 1, 128>}, {pipeline_mode = #tpu.pipeline_mode<synchronous>, transform_indices = @transform_3, window_bounds = array<i64: 2, 8>}, {pipeline_mode = #tpu.pipeline_mode<synchronous>, transform_indices = @transform_4, window_bounds = array<i64: 128, 128>}, {pipeline_mode = #tpu.pipeline_mode<synchronous>, transform_indices = @transform_5, window_bounds = array<i64: 1, 128>}, {pipeline_mode = #tpu.pipeline_mode<synchronous>, transform_indices = @transform_6, window_bounds = array<i64: 2, 128>}]} {
    %c0 = arith.constant 0 : index
    %c0_0 = arith.constant 0 : index
    %0 = vector.load %arg1[%c0, %c0_0] : memref<8x128xbf16, #tpu.memory_space<vmem>>, vector<8x128xbf16>
    %c0_1 = arith.constant 0 : index
    %c0_2 = arith.constant 0 : index
    %1 = vector.load %arg2[%c0_1, %c0_2] : memref<128x128xbf16, #tpu.memory_space<vmem>>, vector<128x128xbf16>
    %cst = arith.constant dense<0.000000e+00> : vector<8x128xf32>
    %2 = tpu.matmul %0, %1, %cst {dimension_numbers = #tpu.dot_dimension_numbers<[1], [0], [0], [1], [0, 0, 1, 1], [], []>} : vector<8x128xbf16>, vector<128x128xbf16>, vector<8x128xf32> -> vector<8x128xf32>
    %c0_3 = arith.constant 0 : index
    %c0_4 = arith.constant 0 : index
    %3 = vector.load %arg3[%c0_3, %c0_4] : memref<1x128xf32, #tpu.memory_space<vmem>>, vector<1x128xf32>
    %4 = vector.broadcast %3 : vector<1x128xf32> to vector<8x128xf32>
    %5 = arith.addf %2, %4 : vector<8x128xf32>
    %cst_5 = arith.constant 0.000000e+00 : f32
    %6 = vector.broadcast %cst_5 : f32 to vector<8x128xf32>
    %7 = arith.maximumf %5, %6 : vector<8x128xf32>
    %c0_6 = arith.constant 0 : index
    %c0_7 = arith.constant 0 : index
    %8 = vector.load %arg4[%c0_6, %c0_7] : memref<2x8xf32, #tpu.memory_space<vmem>>, vector<2x8xf32>
    %cst_8 = arith.constant dense<0.000000e+00> : vector<2x128xf32>
    %9 = tpu.matmul %8, %7, %cst_8 {dimension_numbers = #tpu.dot_dimension_numbers<[1], [0], [0], [1], [0, 0, 1, 1], [], []>} : vector<2x8xf32>, vector<8x128xf32>, vector<2x128xf32> -> vector<2x128xf32>
    %c0_9 = arith.constant 0 : index
    %c0_10 = arith.constant 0 : index
    %10 = vector.load %arg5[%c0_9, %c0_10] : memref<128x128xf32, #tpu.memory_space<vmem>>, vector<128x128xf32>
    %cst_11 = arith.constant dense<0.000000e+00> : vector<2x128xf32>
    %11 = tpu.matmul %9, %10, %cst_11 {dimension_numbers = #tpu.dot_dimension_numbers<[1], [0], [0], [1], [0, 0, 1, 1], [], []>} : vector<2x128xf32>, vector<128x128xf32>, vector<2x128xf32> -> vector<2x128xf32>
    %c0_12 = arith.constant 0 : index
    %c0_13 = arith.constant 0 : index
    %12 = vector.load %arg6[%c0_12, %c0_13] : memref<1x128xf32, #tpu.memory_space<vmem>>, vector<1x128xf32>
    %13 = vector.broadcast %12 : vector<1x128xf32> to vector<2x128xf32>
    %14 = arith.addf %11, %13 : vector<2x128xf32>
    %c0_14 = arith.constant 0 : index
    %c0_15 = arith.constant 0 : index
    %15 = vector.load %arg7[%c0_14, %c0_15] : memref<2x128xf32, #tpu.memory_space<vmem>>, vector<2x128xf32>
    tpu.vector_store %arg7[%c0_14, %c0_15], %14 {strides = array<i32>} : memref<2x128xf32, #tpu.memory_space<vmem>>, vector<2x128xf32>,
    return
  }
  func.func @transform_0(%arg0: i32) -> (i32, i32) {
    %c0_i32 = arith.constant 0 : i32
    %c0_i32_0 = arith.constant 0 : i32
    %c0_i32_1 = arith.constant 0 : i32
    return %c0_i32, %c0_i32_0 : i32, i32
  }
  func.func @transform_1(%arg0: i32) -> (i32, i32) {
    %c0_i32 = arith.constant 0 : i32
    %c0_i32_0 = arith.constant 0 : i32
    %c0_i32_1 = arith.constant 0 : i32
    return %c0_i32, %c0_i32_0 : i32, i32
  }
  func.func @transform_2(%arg0: i32) -> (i32, i32) {
    %c0_i32 = arith.constant 0 : i32
    %c0_i32_0 = arith.constant 0 : i32
    %c0_i32_1 = arith.constant 0 : i32
    return %c0_i32, %c0_i32_0 : i32, i32
  }
  func.func @transform_3(%arg0: i32) -> (i32, i32) {
    %c0_i32 = arith.constant 0 : i32
    %c0_i32_0 = arith.constant 0 : i32
    %c0_i32_1 = arith.constant 0 : i32
    return %c0_i32, %c0_i32_0 : i32, i32
  }
  func.func @transform_4(%arg0: i32) -> (i32, i32) {
    %c0_i32 = arith.constant 0 : i32
    %c0_i32_0 = arith.constant 0 : i32
    %c0_i32_1 = arith.constant 0 : i32
    return %c0_i32, %c0_i32_0 : i32, i32
  }
  func.func @transform_5(%arg0: i32) -> (i32, i32) {
    %c0_i32 = arith.constant 0 : i32
    %c0_i32_0 = arith.constant 0 : i32
    %c0_i32_1 = arith.constant 0 : i32
    return %c0_i32, %c0_i32_0 : i32, i32
  }
  func.func @transform_6(%arg0: i32) -> (i32, i32) {
    %c0_i32 = arith.constant 0 : i32
    %c0_i32_0 = arith.constant 0 : i32
    %c0_i32_1 = arith.constant 0 : i32
    return %c0_i32, %c0_i32_0 : i32, i32
  }
}

</mosaic_0001>

<llo_original>
// kernel: osnet_reid_forward.6
$region0: #{osnet_reid_forward.6}
  #allocation0 [shape = 'u32[]', space=smem, size = 0x4, offset = 0x4, fixed_abs, tag = 'smem constant byte address 0x4 - core index']
  #allocation1 [shape = 'u32[144,128]{1,0:T(1,128)}', space=vmem, size = 0x12000, scoped, tag = 'internal scratch']
  %s0 = inlined_call_operand.vmem [shape: bf16[512,256], index: 0, kind: input, shape index: {}]
  %s1 = inlined_call_operand.vmem [shape: bf16[256,128], index: 1, kind: input, shape index: {}]
  %s2 = inlined_call_operand.vmem [shape: f32[1,128], index: 2, kind: input, shape index: {}]
  %s3 = inlined_call_operand.vmem [shape: bf16[512,128], index: 3, kind: output, shape index: {}]
  %s4 = sld [smem:[#allocation0]]
  $region45: #{osnet_reid_forward.6} parent=0
    _
  %s6 = ssub.s32 1, %s4
  %s7 = scalar_select 0, %s6, %s4
  loop: start=0, step=1, limit=4
  $region2: #{osnet_reid_forward.6} parent=0 // loop_pre_header
    _
  $region3: #{osnet_reid_forward.6} parent=0 // loop_header
    %s9 = sphi 0, %s13
    %p10 = scmp.ge.s32.totalorder %s9, 4
    %s16 = sphi 0, %s28
    %s17 = sphi 0, %s24
    %s18 = sphi 0, %s16
    %s19 = sphi 0, %s17
    %s20 = sphi 0, %s18
    %s21 = sphi 0, %s19
    %s31 = sphi 0, %s33
    %s34 = sphi 0, %s31
    %s35 = sphi 0, %s34
    %s51 = sphi 0, %s35
    %s57 = sphi 0, %s59
    %s60 = sphi 0, %s57
    %s61 = sphi 0, %s60
    %s77 = sphi 0, %s61
    %s83 = sphi 0, %s85
    %s86 = sphi 0, %s83
    %s87 = sphi 0, %s86
    %s103 = sphi 0, %s87
    %s111 = sphi 0, %s113
    %s114 = sphi 0, %s111
    %s115 = sphi 0, %s114
    %s131 = sphi 0, %s115
  $region4: #{osnet_reid_forward.6} parent=0 // loop_header_branch
    %12 = sbr.rel (%p10) target = $region8
  $region5: #{osnet_reid_forward.6} parent=0 // loop_body
    %s14 = ssub.s32 %s9, 1
    %s15 = ssub.s32 %s9, 2
    %s22 = sadd.s32 1, %s17
    %p23 = scmp.ge.s32.totalorder %s22, 1
    %s24 = scalar_select %p23, 0, %s22
    %s25 = sadd.s32 1, %s16
    %s26 = scalar_select %p23, %s25, %s16
    %p27 = scmp.ge.s32.totalorder %s26, 2
    %s28 = scalar_select %p27, 0, %s26
    %s29 = ssub.s32 %s16, %s28
    %p30 = scmp.eq.s32.totalorder %s29, 0
    %s32 = sadd.s32 %s31, 1
    %s33 = scalar_select %p30, %s31, %s32
    %p36 = pneg %p30
    %p37 = scmp.eq.s32.totalorder %s9, 1
    %p38 = por %p36, %p37
    %p39 = scmp.ne.s32.totalorder %s31, %s34
    %p40 = scmp.eq.s32.totalorder %s9, 0
    %p41 = por %p39, %p40
    %p42 = scmp.ne.s32.totalorder %s31, %s34
    %p43 = scmp.eq.s32.totalorder %s14, 1
    %p44 = por %p42, %p43
    %p45 = scmp.ne.s32.totalorder %s34, %s35
    %p46 = scmp.eq.s32.totalorder %s14, 0
    %p47 = por %p45, %p46
    %p48 = scmp.ne.s32.totalorder %s34, %s35
    %p49 = scmp.eq.s32.totalorder %s15, 1
    %p50 = por %p48, %p49
    %p52 = scmp.ne.s32.totalorder %s35, %s51
    %p53 = scmp.eq.s32.totalorder %s15, 0
    %p54 = por %p52, %p53
    %s55 = ssub.s32 %s17, %s24
    %p56 = scmp.eq.s32.totalorder %s55, 0
    %s58 = sadd.s32 %s57, 1
    %s59 = scalar_select %p56, %s57, %s58
    %p62 = pneg %p56
    %p63 = scmp.eq.s32.totalorder %s9, 1
    %p64 = por %p62, %p63
    %p65 = scmp.ne.s32.totalorder %s57, %s60
    %p66 = scmp.eq.s32.totalorder %s9, 0
    %p67 = por %p65, %p66
    %p68 = scmp.ne.s32.totalorder %s57, %s60
    %p69 = scmp.eq.s32.totalorder %s14, 1
    %p70 = por %p68, %p69
    %p71 = scmp.ne.s32.totalorder %s60, %s61
    %p72 = scmp.eq.s32.totalorder %s14, 0
    %p73 = por %p71, %p72
    %p74 = scmp.ne.s32.totalorder %s60, %s61
    %p75 = scmp.eq.s32.totalorder %s15, 1
    %p76 = por %p74, %p75
    %p78 = scmp.ne.s32.totalorder %s61, %s77
    %p79 = scmp.eq.s32.totalorder %s15, 0
    %p80 = por %p78, %p79
    %s81 = ssub.s32 %s17, %s24
    %p82 = scmp.eq.s32.totalorder %s81, 0
    %s84 = sadd.s32 %s83, 1
    %s85 = scalar_select %p82, %s83, %s84
    %p88 = pneg %p82
    %p89 = scmp.eq.s32.totalorder %s9, 1
    %p90 = por %p88, %p89
    %p91 = scmp.ne.s32.totalorder %s83, %s86
    %p92 = scmp.eq.s32.totalorder %s9, 0
    %p93 = por %p91, %p92
    %p94 = scmp.ne.s32.totalorder %s83, %s86
    %p95 = scmp.eq.s32.totalorder %s14, 1
    %p96 = por %p94, %p95
    %p97 = scmp.ne.s32.totalorder %s86, %s87
    %p98 = scmp.eq.s32.totalorder %s14, 0
    %p99 = por %p97, %p98
    %p100 = scmp.ne.s32.totalorder %s86, %s87
    %p101 = scmp.eq.s32.totalorder %s15, 1
    %p102 = por %p100, %p101
    %p104 = scmp.ne.s32.totalorder %s87, %s103
    %p105 = scmp.eq.s32.totalorder %s15, 0
    %p106 = por %p104, %p105
    %s107 = ssub.s32 %s16, %s28
    %s108 = ssub.s32 %s17, %s24
    %s109 = sor.u32 %s107, %s108
    %p110 = scmp.eq.s32.totalorder %s109, 0
    %s112 = sadd.s32 %s111, 1
    %s113 = scalar_select %p110, %s111, %s112
    %p116 = pneg %p110
    %p117 = scmp.eq.s32.totalorder %s9, 1
    %p118 = por %p116, %p117
    %p119 = scmp.ne.s32.totalorder %s111, %s114
    %p120 = scmp.eq.s32.totalorder %s9, 0
    %p121 = por %p119, %p120
    %p122 = scmp.ne.s32.totalorder %s111, %s114
    %p123 = scmp.eq.s32.totalorder %s14, 1
    %p124 = por %p122, %p123
    %p125 = scmp.ne.s32.totalorder %s114, %s115
    %p126 = scmp.eq.s32.totalorder %s14, 0
    %p127 = por %p125, %p126
    %p128 = scmp.ne.s32.totalorder %s114, %s115
    %p129 = scmp.eq.s32.totalorder %s15, 1
    %p130 = por %p128, %p129
    %p132 = scmp.ne.s32.totalorder %s115, %s131
    %p133 = scmp.eq.s32.totalorder %s15, 0
    %p134 = por %p132, %p133
    %p135 = scmp.le.s32.totalorder 1, %s9
    %p136 = scmp.lt.s32.totalorder %s9, 3
    %p137 = pnand %p135, %p136
    %p138 = pneg %p137
    // Predicated region
    $region9: #{osnet_reid_forward.6} parent=5 // pred_check
      _
    $region10: #{osnet_reid_forward.6} parent=5 // pred_check_branch
      %140 = sbr.rel (%p137) target = $region12
    $region11: #{osnet_reid_forward.6} parent=5 // pred_region
      %s141 = ssub.s32 %s9, 1
      // Predicated region
      $region13: #{osnet_reid_forward.6} parent=11 // pred_check
        %p142 = pneg %p73
      $region14: #{osnet_reid_forward.6} parent=11 // pred_check_branch
        %144 = sbr.rel (%p142) target = $region16
      $region15: #{osnet_reid_forward.6} parent=11 // pred_region
        %p145 = scmp.lt.s32.totalorder %s19, 0
        %s146 = scalar_select %p145, %s19, 0
        %s147 = smul.addr %s146, 4
        %s148 = scalar_lea.vmem %s1, %s147
      $region16: #{osnet_reid_forward.6} parent=11 // pred_fallthru
        _
      // Predicated region
      $region17: #{osnet_reid_forward.6} parent=11 // pred_check
        %p149 = pneg %p99
      $region18: #{osnet_reid_forward.6} parent=11 // pred_check_branch
        %151 = sbr.rel (%p149) target = $region20
      $region19: #{osnet_reid_forward.6} parent=11 // pred_region
        %p152 = scmp.lt.s32.totalorder %s19, 0
        %s153 = scalar_select %p152, %s19, 0
        %s154 = scalar_lea.vmem %s2, %s153
      $region20: #{osnet_reid_forward.6} parent=11 // pred_fallthru
        _
    $region12: #{osnet_reid_forward.6} parent=5 // pred_fallthru
      _
    %p155 = scmp.lt.s32.totalorder %s9, 2
    // Predicated region
    $region21: #{osnet_reid_forward.6} parent=5 // pred_check
      %p156 = pneg %p155
    $region22: #{osnet_reid_forward.6} parent=5 // pred_check_branch
      %158 = sbr.rel (%p156) target = $region24
    $region23: #{osnet_reid_forward.6} parent=5 // pred_region
      // Predicated region
      $region25: #{osnet_reid_forward.6} parent=23 // pred_check
        %p159 = pneg %p41
      $region26: #{osnet_reid_forward.6} parent=23 // pred_check_branch
        %161 = sbr.rel (%p159) target = $region28
      $region27: #{osnet_reid_forward.6} parent=23 // pred_region
        %s162 = smul.u32 32, %s16
        %p163 = scmp.lt.s32.totalorder %s162, 63
        %s164 = scalar_select %p163, %s162, 63
        %s165 = smul.addr %s164, 2
        %s166 = smul.addr %s165, 4
        %s167 = scalar_lea.vmem %s0, %s166
        %s168 = smul.u32 32, %s16
      $region28: #{osnet_reid_forward.6} parent=23 // pred_fallthru
        _
    $region24: #{osnet_reid_forward.6} parent=5 // pred_fallthru
      _
    %p169 = scmp.le.s32.totalorder 1, %s9
    %p170 = scmp.lt.s32.totalorder %s9, 3
    %p171 = pnand %p169, %p170
    %p172 = pneg %p171
    // Predicated region
    $region29: #{osnet_reid_forward.6} parent=5 // pred_check
      _
    $region30: #{osnet_reid_forward.6} parent=5 // pred_check_branch
      %174 = sbr.rel (%p171) target = $region32
    $region31: #{osnet_reid_forward.6} parent=5 // pred_region
      %s175 = ssub.s32 %s9, 1
      %s176 = smul.u32 32, %s18
      %p177 = scmp.lt.s32.totalorder %s176, 63
      %s178 = scalar_select %p177, %s176, 63
      %s179 = smul.addr %s178, 2
      %s180 = smul.addr %s179, 4
      %s181 = scalar_lea.vmem %s0, %s180
      %p182 = pneg %p47
      %p183 = pneg %p44
      %p184 = scmp.lt.s32.totalorder %s19, 0
      %s185 = scalar_select %p184, %s19, 0
      %s186 = smul.addr %s185, 4
      %s187 = scalar_lea.vmem %s1, %s186
      %p188 = pneg %p73
      %p189 = pneg %p70
      %p190 = scmp.lt.s32.totalorder %s19, 0
      %s191 = scalar_select %p190, %s19, 0
      %s192 = scalar_lea.vmem %s2, %s191
      %p193 = pneg %p99
      %p194 = pneg %p96
      %p195 = pneg %p127
      %p196 = pneg %p124
      %s197 = smul.u32 32, %s18
      %p198 = scmp.lt.s32.totalorder %s197, 63
      %s199 = scalar_select %p198, %s197, 63
      %p200 = scmp.lt.s32.totalorder %s19, 0
      %s201 = scalar_select %p200, %s19, 0
      %s202 = sadd.s32 %s201, %s199
      %s203 = smul.addr %s202, 4
      %s204 = scalar_lea.vmem %s3, %s203
      %s205 = smul.u32 32, %s18
      %p206 = scmp.lt.s32.totalorder %s205, 63
      %s207 = scalar_select %p206, %s205, 63
      %s208 = smul.addr %s207, 2
      %s209 = smul.addr %s208, 4
      %s210 = scalar_lea.vmem %s0, %s209
      %s211 = smul.u32 32, %s18
      %p212 = scmp.lt.s32.totalorder %s19, 0
      %s213 = scalar_select %p212, %s19, 0
      %s214 = smul.addr %s213, 4
      %s215 = scalar_lea.vmem %s1, %s214
      %p216 = scmp.lt.s32.totalorder %s19, 0
      %s217 = scalar_select %p216, %s19, 0
      %s218 = scalar_lea.vmem %s2, %s217
      %s219 = smul.u32 32, %s18
      %p220 = scmp.lt.s32.totalorder %s219, 63
      %s221 = scalar_select %p220, %s219, 63
      %p222 = scmp.lt.s32.totalorder %s19, 0
      %s223 = scalar_select %p222, %s19, 0
      %s224 = sadd.s32 %s223, %s221
      %s225 = smul.addr %s224, 4
      %s226 = scalar_lea.vmem %s3, %s225
      %s227 = smul.u32 32, %s18
      %v229 = vld [vmem:[%s210] sm:$0xff]
      %v230 = vld [vmem:[%s210 + $0x8] sm:$0xff]
      %v231 = vld [vmem:[%s210 + $0x10] sm:$0xff]
      %v232 = vld [vmem:[%s210 + $0x18] sm:$0xff]
      %v233 = vld [vmem:[%s210 + $0x20] sm:$0xff]
      %v234 = vld [vmem:[%s210 + $0x28] sm:$0xff]
      %v235 = vld [vmem:[%s210 + $0x30] sm:$0xff]
      %v236 = vld [vmem:[%s210 + $0x38] sm:$0xff]
      %v237 = vld [vmem:[%s210 + $0x40] sm:$0xff]
      %v238 = vld [vmem:[%s210 + $0x48] sm:$0xff]
      %v239 = vld [vmem:[%s210 + $0x50] sm:$0xff]
      %v240 = vld [vmem:[%s210 + $0x58] sm:$0xff]
      %v241 = vld [vmem:[%s210 + $0x60] sm:$0xff]
      %v242 = vld [vmem:[%s210 + $0x68] sm:$0xff]
      %v243 = vld [vmem:[%s210 + $0x70] sm:$0xff]
      %v244 = vld [vmem:[%s210 + $0x78] sm:$0xff]
      %v245 = vld [vmem:[%s210 + $0x80] sm:$0xff]
      %v246 = vld [vmem:[%s210 + $0x88] sm:$0xff]
      %v247 = vld [vmem:[%s210 + $0x90] sm:$0xff]
      %v248 = vld [vmem:[%s210 + $0x98] sm:$0xff]
      %v249 = vld [vmem:[%s210 + $0xa0] sm:$0xff]
      %v250 = vld [vmem:[%s210 + $0xa8] sm:$0xff]
      %v251 = vld [vmem:[%s210 + $0xb0] sm:$0xff]
      %v252 = vld [vmem:[%s210 + $0xb8] sm:$0xff]
      %v253 = vld [vmem:[%s210 + $0xc0] sm:$0xff]
      %v254 = vld [vmem:[%s210 + $0xc8] sm:$0xff]
      %v255 = vld [vmem:[%s210 + $0xd0] sm:$0xff]
      %v256 = vld [vmem:[%s210 + $0xd8] sm:$0xff]
      %v257 = vld [vmem:[%s210 + $0xe0] sm:$0xff]
      %v258 = vld [vmem:[%s210 + $0xe8] sm:$0xff]
      %v259 = vld [vmem:[%s210 + $0xf0] sm:$0xff]
      %v260 = vld [vmem:[%s210 + $0xf8] sm:$0xff]
      %v261 = vld [vmem:[%s215] sm:$0xf]
      %v262 = vld [vmem:[%s215 + $0x4] sm:$0xf]
      %v263 = vld [vmem:[%s215 + $0x8] sm:$0xf]
      %v264 = vld [vmem:[%s215 + $0xc] sm:$0xf]
      %v265 = vld [vmem:[%s215 + $0x10] sm:$0xf]
      %v266 = vld [vmem:[%s215 + $0x14] sm:$0xf]
      %v267 = vld [vmem:[%s215 + $0x18] sm:$0xf]
      %v268 = vld [vmem:[%s215 + $0x1c] sm:$0xf]
      %v269 = vld [vmem:[%s215 + $0x20] sm:$0xf]
      %v270 = vld [vmem:[%s215 + $0x24] sm:$0xf]
      %v271 = vld [vmem:[%s215 + $0x28] sm:$0xf]
      %v272 = vld [vmem:[%s215 + $0x2c] sm:$0xf]
      %v273 = vld [vmem:[%s215 + $0x30] sm:$0xf]
      %v274 = vld [vmem:[%s215 + $0x34] sm:$0xf]
      %v275 = vld [vmem:[%s215 + $0x38] sm:$0xf]
      %v276 = vld [vmem:[%s215 + $0x3c] sm:$0xf]
      %v277 = vld [vmem:[%s215 + $0x40] sm:$0xf]
      %v278 = vld [vmem:[%s215 + $0x44] sm:$0xf]
      %v279 = vld [vmem:[%s215 + $0x48] sm:$0xf]
      %v280 = vld [vmem:[%s215 + $0x4c] sm:$0xf]
      %v281 = vld [vmem:[%s215 + $0x50] sm:$0xf]
      %v282 = vld [vmem:[%s215 + $0x54] sm:$0xf]
      %v283 = vld [vmem:[%s215 + $0x58] sm:$0xf]
      %v284 = vld [vmem:[%s215 + $0x5c] sm:$0xf]
      %v285 = vld [vmem:[%s215 + $0x60] sm:$0xf]
      %v286 = vld [vmem:[%s215 + $0x64] sm:$0xf]
      %v287 = vld [vmem:[%s215 + $0x68] sm:$0xf]
      %v288 = vld [vmem:[%s215 + $0x6c] sm:$0xf]
      %v289 = vld [vmem:[%s215 + $0x70] sm:$0xf]
      %v290 = vld [vmem:[%s215 + $0x74] sm:$0xf]
      %v291 = vld [vmem:[%s215 + $0x78] sm:$0xf]
      %v292 = vld [vmem:[%s215 + $0x7c] sm:$0xf]
      %v293 = vld [vmem:[%s218] sm:$0x1]
      %v295 = vlaneseq
      %v296 = vshrl.u32 %v295, 7
      %v297 = vsub.s32 0, %v296
      %v298 = vrot.slane %v293, %v297
      %v332 = vunpack.c.l.b16 %v229
      %v333 = vunpack.c.h.b16 %v229
      %v334 = vunpack.c.l.b16 %v230
      %v335 = vunpack.c.h.b16 %v230
      %v336 = vunpack.c.l.b16 %v231
      %v337 = vunpack.c.h.b16 %v231
      %v338 = vunpack.c.l.b16 %v232
      %v339 = vunpack.c.h.b16 %v232
      %v340 = vunpack.c.l.b16 %v233
      %v341 = vunpack.c.h.b16 %v233
      %v342 = vunpack.c.l.b16 %v234
      %v343 = vunpack.c.h.b16 %v234
      %v344 = vunpack.c.l.b16 %v235
      %v345 = vunpack.c.h.b16 %v235
      %v346 = vunpack.c.l.b16 %v236
      %v347 = vunpack.c.h.b16 %v236
      %v348 = vunpack.c.l.b16 %v237
      %v349 = vunpack.c.h.b16 %v237
      %v350 = vunpack.c.l.b16 %v238
      %v351 = vunpack.c.h.b16 %v238
      %v352 = vunpack.c.l.b16 %v239
      %v353 = vunpack.c.h.b16 %v239
      %v354 = vunpack.c.l.b16 %v240
      %v355 = vunpack.c.h.b16 %v240
      %v356 = vunpack.c.l.b16 %v241
      %v357 = vunpack.c.h.b16 %v241
      %v358 = vunpack.c.l.b16 %v242
      %v359 = vunpack.c.h.b16 %v242
      %v360 = vunpack.c.l.b16 %v243
      %v361 = vunpack.c.h.b16 %v243
      %v362 = vunpack.c.l.b16 %v244
      %v363 = vunpack.c.h.b16 %v244
      %v364 = vunpack.c.l.b16 %v245
      %v365 = vunpack.c.h.b16 %v245
      %v366 = vunpack.c.l.b16 %v246
      %v367 = vunpack.c.h.b16 %v246
      %v368 = vunpack.c.l.b16 %v247
      %v369 = vunpack.c.h.b16 %v247
      %v370 = vunpack.c.l.b16 %v248
      %v371 = vunpack.c.h.b16 %v248
      %v372 = vunpack.c.l.b16 %v249
      %v373 = vunpack.c.h.b16 %v249
      %v374 = vunpack.c.l.b16 %v250
      %v375 = vunpack.c.h.b16 %v250
      %v376 = vunpack.c.l.b16 %v251
      %v377 = vunpack.c.h.b16 %v251
      %v378 = vunpack.c.l.b16 %v252
      %v379 = vunpack.c.h.b16 %v252
      %v380 = vunpack.c.l.b16 %v253
      %v381 = vunpack.c.h.b16 %v253
      %v382 = vunpack.c.l.b16 %v254
      %v383 = vunpack.c.h.b16 %v254
      %v384 = vunpack.c.l.b16 %v255
      %v385 = vunpack.c.h.b16 %v255
      %v386 = vunpack.c.l.b16 %v256
      %v387 = vunpack.c.h.b16 %v256
      %v388 = vunpack.c.l.b16 %v257
      %v389 = vunpack.c.h.b16 %v257
      %v390 = vunpack.c.l.b16 %v258
      %v391 = vunpack.c.h.b16 %v258
      %v392 = vunpack.c.l.b16 %v259
      %v393 = vunpack.c.h.b16 %v259
      %v394 = vunpack.c.l.b16 %v260
      %v395 = vunpack.c.h.b16 %v260
      %v396 = vpack.c.b16 %v334, %v332
      %v397 = vpack.c.b16 %v335, %v333
      %v398 = vpack.c.b16 %v338, %v336
      %v399 = vpack.c.b16 %v339, %v337
      %v400 = vpack.c.b16 %v342, %v340
      %v401 = vpack.c.b16 %v343, %v341
      %v402 = vpack.c.b16 %v346, %v344
      %v403 = vpack.c.b16 %v347, %v345
      %v404 = vpack.c.b16 %v350, %v348
      %v405 = vpack.c.b16 %v351, %v349
      %v406 = vpack.c.b16 %v354, %v352
      %v407 = vpack.c.b16 %v355, %v353
      %v408 = vpack.c.b16 %v358, %v356
      %v409 = vpack.c.b16 %v359, %v357
      %v410 = vpack.c.b16 %v362, %v360
      %v411 = vpack.c.b16 %v363, %v361
      %v412 = vpack.c.b16 %v366, %v364
      %v413 = vpack.c.b16 %v367, %v365
      %v414 = vpack.c.b16 %v370, %v368
      %v415 = vpack.c.b16 %v371, %v369
      %v416 = vpack.c.b16 %v374, %v372
      %v417 = vpack.c.b16 %v375, %v373
      %v418 = vpack.c.b16 %v378, %v376
      %v419 = vpack.c.b16 %v379, %v377
      %v420 = vpack.c.b16 %v382, %v380
      %v421 = vpack.c.b16 %v383, %v381
      %v422 = vpack.c.b16 %v386, %v384
      %v423 = vpack.c.b16 %v387, %v385
      %v424 = vpack.c.b16 %v390, %v388
      %v425 = vpack.c.b16 %v391, %v389
      %v426 = vpack.c.b16 %v394, %v392
      %v427 = vpack.c.b16 %v395, %v393
      %v492 = vunpack.c.l.b16 %v261
      %v493 = vunpack.c.l.b16 %v262
      %v494 = vunpack.c.l.b16 %v263
      %v495 = vunpack.c.l.b16 %v264
      %v496 = vunpack.c.l.b16 %v265
      %v497 = vunpack.c.l.b16 %v266
      %v498 = vunpack.c.l.b16 %v267
      %v499 = vunpack.c.l.b16 %v268
      %v500 = vunpack.c.l.b16 %v269
      %v501 = vunpack.c.l.b16 %v270
      %v502 = vunpack.c.l.b16 %v271
      %v503 = vunpack.c.l.b16 %v272
      %v504 = vunpack.c.l.b16 %v273
      %v505 = vunpack.c.l.b16 %v274
      %v506 = vunpack.c.l.b16 %v275
      %v507 = vunpack.c.l.b16 %v276
      %v508 = vunpack.c.l.b16 %v277
      %v509 = vunpack.c.l.b16 %v278
      %v510 = vunpack.c.l.b16 %v279
      %v511 = vunpack.c.l.b16 %v280
      %v512 = vunpack.c.l.b16 %v281
      %v513 = vunpack.c.l.b16 %v282
      %v514 = vunpack.c.l.b16 %v283
      %v515 = vunpack.c.l.b16 %v284
      %v516 = vunpack.c.l.b16 %v285
      %v517 = vunpack.c.l.b16 %v286
      %v518 = vunpack.c.l.b16 %v287
      %v519 = vunpack.c.l.b16 %v288
      %v520 = vunpack.c.l.b16 %v289
      %v521 = vunpack.c.l.b16 %v290
      %v522 = vunpack.c.l.b16 %v291
      %v523 = vunpack.c.l.b16 %v292
      %v524 = vpack.c.b16 %v493, %v492
      %v525 = vpack.c.b16 %v495, %v494
      %v526 = vpack.c.b16 %v497, %v496
      %v527 = vpack.c.b16 %v499, %v498
      %v528 = vpack.c.b16 %v501, %v500
      %v529 = vpack.c.b16 %v503, %v502
      %v530 = vpack.c.b16 %v505, %v504
      %v531 = vpack.c.b16 %v507, %v506
      %v532 = vpack.c.b16 %v509, %v508
      %v533 = vpack.c.b16 %v511, %v510
      %v534 = vpack.c.b16 %v513, %v512
      %v535 = vpack.c.b16 %v515, %v514
      %v536 = vpack.c.b16 %v517, %v516
      %v537 = vpack.c.b16 %v519, %v518
      %v538 = vpack.c.b16 %v521, %v520
      %v539 = vpack.c.b16 %v523, %v522
      %556 = vmatprep.subr.bf16.mxu0 0
      %557 = vmatpush1.bf16.msra.mxu0 %v531
      %558 = vmatprep.subr.bf16.mxu0 0
      %559 = vmatpush1.bf16.msra.mxu0 %v530
      %560 = vmatprep.subr.bf16.mxu0 0
      %561 = vmatpush1.bf16.msra.mxu0 %v529
      %562 = vmatprep.subr.bf16.mxu0 0
      %563 = vmatpush1.bf16.msra.mxu0 %v528
      %564 = vmatprep.subr.bf16.mxu0 0
      %565 = vmatpush1.bf16.msra.mxu0 %v527
      %566 = vmatprep.subr.bf16.mxu0 0
      %567 = vmatpush1.bf16.msra.mxu0 %v526
      %568 = vmatprep.subr.bf16.mxu0 0
      %569 = vmatpush1.bf16.msra.mxu0 %v525
      %570 = vmatprep.subr.bf16.mxu0 0
      %571 = vmatpush1.bf16.msra.mxu0 %v524
      %572 = vmatprep.subr.bf16.mxu0 0
      %573 = vmatpush2.bf16.msra.mxu0 %v539
      %574 = vmatprep.subr.bf16.mxu0 0
      %575 = vmatpush2.bf16.msra.mxu0 %v538
      %576 = vmatprep.subr.bf16.mxu0 0
      %577 = vmatpush2.bf16.msra.mxu0 %v537
      %578 = vmatprep.subr.bf16.mxu0 0
      %579 = vmatpush2.bf16.msra.mxu0 %v536
      %580 = vmatprep.subr.bf16.mxu0 0
      %581 = vmatpush2.bf16.msra.mxu0 %v535
      %582 = vmatprep.subr.bf16.mxu0 0
      %583 = vmatpush2.bf16.msra.mxu0 %v534
      %584 = vmatprep.subr.bf16.mxu0 0
      %585 = vmatpush2.bf16.msra.mxu0 %v533
      %586 = vmatprep.subr.bf16.mxu0 0
      %587 = vmatpush2.bf16.msra.mxu0 %v532
      %588 = vmatprep.mubr.bf16.mxu0 %v397
      %589 = vmatmul.mubr.bf16.gmra.mxu0 %v396
      %v590 = vpop.f32.mrf.mxu0
      %v591 = vadd.f32 %v298, %v590
      %v592 = vpop.f32.mrf.mxu0
      %v593 = vpop.f32.mrf.mxu0
      %v594 = vadd.f32 %v298, %v593
      %v595 = vpop.f32.mrf.mxu0
      %596 = vmatprep.mubr.bf16.mxu0 %v399
      %597 = vmatmul.mubr.bf16.gmra.mxu0 %v398
      %v598 = vpop.f32.mrf.mxu0
      %v599 = vadd.f32 %v298, %v598
      %v600 = vpop.f32.mrf.mxu0
      %v601 = vpop.f32.mrf.mxu0
      %v602 = vadd.f32 %v298, %v601
      %v603 = vpop.f32.mrf.mxu0
      %604 = vmatprep.mubr.bf16.mxu0 %v401
      %605 = vmatmul.mubr.bf16.gmra.mxu0 %v400
      %v606 = vpop.f32.mrf.mxu0
      %v607 = vadd.f32 %v298, %v606
      %v608 = vpop.f32.mrf.mxu0
      %v609 = vpop.f32.mrf.mxu0
      %v610 = vadd.f32 %v298, %v609
      %v611 = vpop.f32.mrf.mxu0
      %612 = vmatprep.mubr.bf16.mxu0 %v403
      %613 = vmatmul.mubr.bf16.gmra.mxu0 %v402
      %v614 = vpop.f32.mrf.mxu0
      %v615 = vadd.f32 %v298, %v614
      %v616 = vpop.f32.mrf.mxu0
      %v617 = vpop.f32.mrf.mxu0
      %v618 = vadd.f32 %v298, %v617
      %v619 = vpop.f32.mrf.mxu0
      %620 = vmatprep.mubr.bf16.mxu0 %v405
      %621 = vmatmul.mubr.bf16.gmra.mxu0 %v404
      %v622 = vpop.f32.mrf.mxu0
      %v623 = vadd.f32 %v298, %v622
      %v624 = vpop.f32.mrf.mxu0
      %v625 = vpop.f32.mrf.mxu0
      %v626 = vadd.f32 %v298, %v625
      %v627 = vpop.f32.mrf.mxu0
      %628 = vmatprep.mubr.bf16.mxu0 %v407
      %629 = vmatmul.mubr.bf16.gmra.mxu0 %v406
      %v630 = vpop.f32.mrf.mxu0
      %v631 = vadd.f32 %v298, %v630
      %v632 = vpop.f32.mrf.mxu0
      %v633 = vpop.f32.mrf.mxu0
      %v634 = vadd.f32 %v298, %v633
      %v635 = vpop.f32.mrf.mxu0
      %636 = vmatprep.mubr.bf16.mxu0 %v409
      %637 = vmatmul.mubr.bf16.gmra.mxu0 %v408
      %v638 = vpop.f32.mrf.mxu0
      %v639 = vadd.f32 %v298, %v638
      %v640 = vpop.f32.mrf.mxu0
      %v641 = vpop.f32.mrf.mxu0
      %v642 = vadd.f32 %v298, %v641
      %v643 = vpop.f32.mrf.mxu0
      %644 = vmatprep.mubr.bf16.mxu0 %v411
      %645 = vmatmul.mubr.bf16.gmra.mxu0 %v410
      %v646 = vpop.f32.mrf.mxu0
      %v647 = vadd.f32 %v298, %v646
      %v648 = vpop.f32.mrf.mxu0
      %v649 = vpop.f32.mrf.mxu0
      %v650 = vadd.f32 %v298, %v649
      %v651 = vpop.f32.mrf.mxu0
      %652 = vmatprep.mubr.bf16.mxu0 %v413
      %653 = vmatmul.mubr.bf16.gmra.mxu0 %v412
      %v654 = vpop.f32.mrf.mxu0
      %v655 = vadd.f32 %v298, %v654
      %v656 = vpop.f32.mrf.mxu0
      %v657 = vpop.f32.mrf.mxu0
      %v658 = vadd.f32 %v298, %v657
      %v659 = vpop.f32.mrf.mxu0
      %660 = vmatprep.mubr.bf16.mxu0 %v415
      %661 = vmatmul.mubr.bf16.gmra.mxu0 %v414
      %v662 = vpop.f32.mrf.mxu0
      %v663 = vadd.f32 %v298, %v662
      %v664 = vpop.f32.mrf.mxu0
      %v665 = vpop.f32.mrf.mxu0
      %v666 = vadd.f32 %v298, %v665
      %v667 = vpop.f32.mrf.mxu0
      %668 = vmatprep.mubr.bf16.mxu0 %v417
      %669 = vmatmul.mubr.bf16.gmra.mxu0 %v416
      %v670 = vpop.f32.mrf.mxu0
      %v671 = vadd.f32 %v298, %v670
      %v672 = vpop.f32.mrf.mxu0
      %v673 = vpop.f32.mrf.mxu0
      %v674 = vadd.f32 %v298, %v673
      %v675 = vpop.f32.mrf.mxu0
      %676 = vmatprep.mubr.bf16.mxu0 %v419
      %677 = vmatmul.mubr.bf16.gmra.mxu0 %v418
      %v678 = vpop.f32.mrf.mxu0
      %v679 = vadd.f32 %v298, %v678
      %v680 = vpop.f32.mrf.mxu0
      %v681 = vpop.f32.mrf.mxu0
      %v682 = vadd.f32 %v298, %v681
      %v683 = vpop.f32.mrf.mxu0
      %684 = vmatprep.mubr.bf16.mxu0 %v421
      %685 = vmatmul.mubr.bf16.gmra.mxu0 %v420
      %v686 = vpop.f32.mrf.mxu0
      %v687 = vadd.f32 %v298, %v686
      %v688 = vpop.f32.mrf.mxu0
      %v689 = vpop.f32.mrf.mxu0
      %v690 = vadd.f32 %v298, %v689
      %v691 = vpop.f32.mrf.mxu0
      %692 = vmatprep.mubr.bf16.mxu0 %v423
      %693 = vmatmul.mubr.bf16.gmra.mxu0 %v422
      %v694 = vpop.f32.mrf.mxu0
      %v695 = vadd.f32 %v298, %v694
      %v696 = vpop.f32.mrf.mxu0
      %v697 = vpop.f32.mrf.mxu0
      %v698 = vadd.f32 %v298, %v697
      %v699 = vpop.f32.mrf.mxu0
      %700 = vmatprep.mubr.bf16.mxu0 %v425
      %701 = vmatmul.mubr.bf16.gmra.mxu0 %v424
      %v702 = vpop.f32.mrf.mxu0
      %v703 = vadd.f32 %v298, %v702
      %v704 = vpop.f32.mrf.mxu0
      %v705 = vpop.f32.mrf.mxu0
      %v706 = vadd.f32 %v298, %v705
      %v707 = vpop.f32.mrf.mxu0
      %708 = vmatprep.mubr.bf16.mxu0 %v427
      %709 = vmatmul.mubr.bf16.gmra.mxu0 %v426
      %v710 = vpop.f32.mrf.mxu0
      %v711 = vadd.f32 %v298, %v710
      %v712 = vpop.f32.mrf.mxu0
      %v713 = vpop.f32.mrf.mxu0
      %v714 = vadd.f32 %v298, %v713
      %v715 = vpop.f32.mrf.mxu0
      %716 = vdwg.mxu0
      %v717 = vmax.f32 %v591, 0.0
      %v718 = vmax.f32 %v594, 0.0
      %v719 = vmax.f32 %v599, 0.0
      %v720 = vmax.f32 %v602, 0.0
      %v721 = vmax.f32 %v607, 0.0
      %v722 = vmax.f32 %v610, 0.0
      %v723 = vmax.f32 %v615, 0.0
      %v724 = vmax.f32 %v618, 0.0
      %v725 = vmax.f32 %v623, 0.0
      %v726 = vmax.f32 %v626, 0.0
      %v727 = vmax.f32 %v631, 0.0
      %v728 = vmax.f32 %v634, 0.0
      %v729 = vmax.f32 %v639, 0.0
      %v730 = vmax.f32 %v642, 0.0
      %v731 = vmax.f32 %v647, 0.0
      %v732 = vmax.f32 %v650, 0.0
      %v733 = vmax.f32 %v655, 0.0
      %v734 = vmax.f32 %v658, 0.0
      %v735 = vmax.f32 %v663, 0.0
      %v736 = vmax.f32 %v666, 0.0
      %v737 = vmax.f32 %v671, 0.0
      %v738 = vmax.f32 %v674, 0.0
      %v739 = vmax.f32 %v679, 0.0
      %v740 = vmax.f32 %v682, 0.0
      %v741 = vmax.f32 %v687, 0.0
      %v742 = vmax.f32 %v690, 0.0
      %v743 = vmax.f32 %v695, 0.0
      %v744 = vmax.f32 %v698, 0.0
      %v745 = vmax.f32 %v703, 0.0
      %v746 = vmax.f32 %v706, 0.0
      %v747 = vmax.f32 %v711, 0.0
      %v748 = vmax.f32 %v714, 0.0
      %v749 = vpack.c.bf16 %v718, %v717
      %v750 = vpack.c.bf16 %v720, %v719
      %v751 = vpack.c.bf16 %v722, %v721
      %v752 = vpack.c.bf16 %v724, %v723
      %v753 = vpack.c.bf16 %v726, %v725
      %v754 = vpack.c.bf16 %v728, %v727
      %v755 = vpack.c.bf16 %v730, %v729
      %v756 = vpack.c.bf16 %v732, %v731
      %v757 = vpack.c.bf16 %v734, %v733
      %v758 = vpack.c.bf16 %v736, %v735
      %v759 = vpack.c.bf16 %v738, %v737
      %v760 = vpack.c.bf16 %v740, %v739
      %v761 = vpack.c.bf16 %v742, %v741
      %v762 = vpack.c.bf16 %v744, %v743
      %v763 = vpack.c.bf16 %v746, %v745
      %v764 = vpack.c.bf16 %v748, %v747
      %v781 = vunpack.c.l.b16 %v749
      %v782 = vunpack.c.h.b16 %v749
      %v783 = vunpack.c.l.b16 %v750
      %v784 = vunpack.c.h.b16 %v750
      %v785 = vunpack.c.l.b16 %v751
      %v786 = vunpack.c.h.b16 %v751
      %v787 = vunpack.c.l.b16 %v752
      %v788 = vunpack.c.h.b16 %v752
      %v789 = vunpack.c.l.b16 %v753
      %v790 = vunpack.c.h.b16 %v753
      %v791 = vunpack.c.l.b16 %v754
      %v792 = vunpack.c.h.b16 %v754
      %v793 = vunpack.c.l.b16 %v755
      %v794 = vunpack.c.h.b16 %v755
      %v795 = vunpack.c.l.b16 %v756
      %v796 = vunpack.c.h.b16 %v756
      %v797 = vunpack.c.l.b16 %v757
      %v798 = vunpack.c.h.b16 %v757
      %v799 = vunpack.c.l.b16 %v758
      %v800 = vunpack.c.h.b16 %v758
      %v801 = vunpack.c.l.b16 %v759
      %v802 = vunpack.c.h.b16 %v759
      %v803 = vunpack.c.l.b16 %v760
      %v804 = vunpack.c.h.b16 %v760
      %v805 = vunpack.c.l.b16 %v761
      %v806 = vunpack.c.h.b16 %v761
      %v807 = vunpack.c.l.b16 %v762
      %v808 = vunpack.c.h.b16 %v762
      %v809 = vunpack.c.l.b16 %v763
      %v810 = vunpack.c.h.b16 %v763
      %v811 = vunpack.c.l.b16 %v764
      %v812 = vunpack.c.h.b16 %v764
      %v813 = vpack.c.b16 %v781, %v781
      %v814 = vpack.c.b16 %v782, %v782
      %v815 = vpack.c.b16 %v783, %v783
      %v816 = vpack.c.b16 %v784, %v784
      %v817 = vpack.c.b16 %v785, %v785
      %v818 = vpack.c.b16 %v786, %v786
      %v819 = vpack.c.b16 %v787, %v787
      %v820 = vpack.c.b16 %v788, %v788
      %v821 = vpack.c.b16 %v789, %v789
      %v822 = vpack.c.b16 %v790, %v790
      %v823 = vpack.c.b16 %v791, %v791
      %v824 = vpack.c.b16 %v792, %v792
      %v825 = vpack.c.b16 %v793, %v793
      %v826 = vpack.c.b16 %v794, %v794
      %v827 = vpack.c.b16 %v795, %v795
      %v828 = vpack.c.b16 %v796, %v796
      %v829 = vpack.c.b16 %v797, %v797
      %v830 = vpack.c.b16 %v798, %v798
      %v831 = vpack.c.b16 %v799, %v799
      %v832 = vpack.c.b16 %v800, %v800
      %v833 = vpack.c.b16 %v801, %v801
      %v834 = vpack.c.b16 %v802, %v802
      %v835 = vpack.c.b16 %v803, %v803
      %v836 = vpack.c.b16 %v804, %v804
      %v837 = vpack.c.b16 %v805, %v805
      %v838 = vpack.c.b16 %v806, %v806
      %v839 = vpack.c.b16 %v807, %v807
      %v840 = vpack.c.b16 %v808, %v808
      %v841 = vpack.c.b16 %v809, %v809
      %v842 = vpack.c.b16 %v810, %v810
      %v843 = vpack.c.b16 %v811, %v811
      %v844 = vpack.c.b16 %v812, %v812
      %877 = vst [vmem:[%s226] sm:$0xf] %v813
      %878 = vst [vmem:[%s226 + $0x4] sm:$0xf] %v814
      %879 = vst [vmem:[%s226 + $0x8] sm:$0xf] %v815
      %880 = vst [vmem:[%s226 + $0xc] sm:$0xf] %v816
      %881 = vst [vmem:[%s226 + $0x10] sm:$0xf] %v817
      %882 = vst [vmem:[%s226 + $0x14] sm:$0xf] %v818
      %883 = vst [vmem:[%s226 + $0x18] sm:$0xf] %v819
      %884 = vst [vmem:[%s226 + $0x1c] sm:$0xf] %v820
      %885 = vst [vmem:[%s226 + $0x20] sm:$0xf] %v821
      %886 = vst [vmem:[%s226 + $0x24] sm:$0xf] %v822
      %887 = vst [vmem:[%s226 + $0x28] sm:$0xf] %v823
      %888 = vst [vmem:[%s226 + $0x2c] sm:$0xf] %v824
      %889 = vst [vmem:[%s226 + $0x30] sm:$0xf] %v825
      %890 = vst [vmem:[%s226 + $0x34] sm:$0xf] %v826
      %891 = vst [vmem:[%s226 + $0x38] sm:$0xf] %v827
      %892 = vst [vmem:[%s226 + $0x3c] sm:$0xf] %v828
      %893 = vst [vmem:[%s226 + $0x40] sm:$0xf] %v829
      %894 = vst [vmem:[%s226 + $0x44] sm:$0xf] %v830
      %895 = vst [vmem:[%s226 + $0x48] sm:$0xf] %v831
      %896 = vst [vmem:[%s226 + $0x4c] sm:$0xf] %v832
      %897 = vst [vmem:[%s226 + $0x50] sm:$0xf] %v833
      %898 = vst [vmem:[%s226 + $0x54] sm:$0xf] %v834
      %899 = vst [vmem:[%s226 + $0x58] sm:$0xf] %v835
      %900 = vst [vmem:[%s226 + $0x5c] sm:$0xf] %v836
      %901 = vst [vmem:[%s226 + $0x60] sm:$0xf] %v837
      %902 = vst [vmem:[%s226 + $0x64] sm:$0xf] %v838
      %903 = vst [vmem:[%s226 + $0x68] sm:$0xf] %v839
      %904 = vst [vmem:[%s226 + $0x6c] sm:$0xf] %v840
      %905 = vst [vmem:[%s226 + $0x70] sm:$0xf] %v841
      %906 = vst [vmem:[%s226 + $0x74] sm:$0xf] %v842
      %907 = vst [vmem:[%s226 + $0x78] sm:$0xf] %v843
      %908 = vst [vmem:[%s226 + $0x7c] sm:$0xf] %v844
      %s909 = smul.u32 32, %s18
      %p910 = scmp.lt.s32.totalorder %s909, 63
      %s911 = scalar_select %p910, %s909, 63
      %p912 = scmp.lt.s32.totalorder %s19, 0
      %s913 = scalar_select %p912, %s19, 0
      %s914 = sadd.s32 %s913, %s911
      %s915 = smul.addr %s914, 4
      %s916 = scalar_lea.vmem %s3, %s915
      // Predicated region
      $region33: #{osnet_reid_forward.6} parent=31 // pred_check
        %p917 = pneg %p124
      $region34: #{osnet_reid_forward.6} parent=31 // pred_check_branch
        %919 = sbr.rel (%p917) target = $region36
      $region35: #{osnet_reid_forward.6} parent=31 // pred_region
        %s920 = smul.u32 32, %s18
      $region36: #{osnet_reid_forward.6} parent=31 // pred_fallthru
        _
    $region32: #{osnet_reid_forward.6} parent=5 // pred_fallthru
      _
    %p921 = scmp.le.s32.totalorder 2, %s9
    // Predicated region
    $region37: #{osnet_reid_forward.6} parent=5 // pred_check
      %p922 = pneg %p921
    $region38: #{osnet_reid_forward.6} parent=5 // pred_check_branch
      %924 = sbr.rel (%p922) target = $region40
    $region39: #{osnet_reid_forward.6} parent=5 // pred_region
      %s925 = ssub.s32 %s9, 2
      // Predicated region
      $region41: #{osnet_reid_forward.6} parent=39 // pred_check
        %p926 = pneg %p130
      $region42: #{osnet_reid_forward.6} parent=39 // pred_check_branch
        %928 = sbr.rel (%p926) target = $region44
      $region43: #{osnet_reid_forward.6} parent=39 // pred_region
        %s929 = smul.u32 32, %s20
        %p930 = scmp.lt.s32.totalorder %s929, 63
        %s931 = scalar_select %p930, %s929, 63
        %p932 = scmp.lt.s32.totalorder %s21, 0
        %s933 = scalar_select %p932, %s21, 0
        %s934 = sadd.s32 %s933, %s931
        %s935 = smul.addr %s934, 4
        %s936 = scalar_lea.vmem %s3, %s935
      $region44: #{osnet_reid_forward.6} parent=39 // pred_fallthru
        _
    $region40: #{osnet_reid_forward.6} parent=5 // pred_fallthru
      _
  $region6: #{osnet_reid_forward.6} parent=0 // loop_footer
    %s13 = sadd.s32 1, %s9
  $region7: #{osnet_reid_forward.6} parent=0 // loop_footer_branch
    %8 = sbr.rel target = $region3
  $region8: #{osnet_reid_forward.6} parent=0 // loop_exit
    _

// kernel: osnet_reid_forward.7
$region0: #{osnet_reid_forward.7}
  #allocation0 [shape = 'u32[]', space=smem, size = 0x4, offset = 0x4, fixed_abs, tag = 'smem constant byte address 0x4 - core index']
  #allocation1 [shape = 'u32[144,128]{1,0:T(1,128)}', space=vmem, size = 0x12000, scoped, tag = 'internal scratch']
  %s0 = inlined_call_operand.vmem [shape: bf16[9,128,128], index: 0, kind: input, shape index: {}]
  %s1 = inlined_call_operand.vmem [shape: bf16[128,128], index: 1, kind: output, shape index: {}]
  %s2 = sld [smem:[#allocation0]]
  $region14: #{osnet_reid_forward.7} parent=0
    _
  %s4 = ssub.s32 1, %s2
  %s5 = scalar_select 0, %s4, %s2
  // Predicated region
  $region2: #{osnet_reid_forward.7} parent=0 // pred_check
    _
  $region3: #{osnet_reid_forward.7} parent=0 // pred_check_branch
    %7 = sbr.rel (0) target = $region5
  $region4: #{osnet_reid_forward.7} parent=0 // pred_region
    _
  $region5: #{osnet_reid_forward.7} parent=0 // pred_fallthru
    _
  %v9 = vld [vmem:[%s0] sm:$0xf]
  %v10 = vld [vmem:[%s0 + $0x4] sm:$0xf]
  %v11 = vld [vmem:[%s0 + $0x8] sm:$0xf]
  %v12 = vld [vmem:[%s0 + $0xc] sm:$0xf]
  %v13 = vld [vmem:[%s0 + $0x10] sm:$0xf]
  %v14 = vld [vmem:[%s0 + $0x14] sm:$0xf]
  %v15 = vld [vmem:[%s0 + $0x18] sm:$0xf]
  %v16 = vld [vmem:[%s0 + $0x1c] sm:$0xf]
  %v17 = vld [vmem:[%s0 + $0x20] sm:$0xf]
  %v18 = vld [vmem:[%s0 + $0x24] sm:$0xf]
  %v19 = vld [vmem:[%s0 + $0x28] sm:$0xf]
  %v20 = vld [vmem:[%s0 + $0x2c] sm:$0xf]
  %v21 = vld [vmem:[%s0 + $0x30] sm:$0xf]
  %v22 = vld [vmem:[%s0 + $0x34] sm:$0xf]
  %v23 = vld [vmem:[%s0 + $0x38] sm:$0xf]
  %v24 = vld [vmem:[%s0 + $0x3c] sm:$0xf]
  %v25 = vld [vmem:[%s0 + $0x40] sm:$0xf]
  %v26 = vld [vmem:[%s0 + $0x44] sm:$0xf]
  %v27 = vld [vmem:[%s0 + $0x48] sm:$0xf]
  %v28 = vld [vmem:[%s0 + $0x4c] sm:$0xf]
  %v29 = vld [vmem:[%s0 + $0x50] sm:$0xf]
  %v30 = vld [vmem:[%s0 + $0x54] sm:$0xf]
  %v31 = vld [vmem:[%s0 + $0x58] sm:$0xf]
  %v32 = vld [vmem:[%s0 + $0x5c] sm:$0xf]
  %v33 = vld [vmem:[%s0 + $0x60] sm:$0xf]
  %v34 = vld [vmem:[%s0 + $0x64] sm:$0xf]
  %v35 = vld [vmem:[%s0 + $0x68] sm:$0xf]
  %v36 = vld [vmem:[%s0 + $0x6c] sm:$0xf]
  %v37 = vld [vmem:[%s0 + $0x70] sm:$0xf]
  %v38 = vld [vmem:[%s0 + $0x74] sm:$0xf]
  %v39 = vld [vmem:[%s0 + $0x78] sm:$0xf]
  %v40 = vld [vmem:[%s0 + $0x7c] sm:$0xf]
  %v41 = vld [vmem:[%s0 + $0x80] sm:$0xf]
  %v42 = vld [vmem:[%s0 + $0x84] sm:$0xf]
  %v43 = vld [vmem:[%s0 + $0x88] sm:$0xf]
  %v44 = vld [vmem:[%s0 + $0x8c] sm:$0xf]
  %v45 = vld [vmem:[%s0 + $0x90] sm:$0xf]
  %v46 = vld [vmem:[%s0 + $0x94] sm:$0xf]
  %v47 = vld [vmem:[%s0 + $0x98] sm:$0xf]
  %v48 = vld [vmem:[%s0 + $0x9c] sm:$0xf]
  %v49 = vld [vmem:[%s0 + $0xa0] sm:$0xf]
  %v50 = vld [vmem:[%s0 + $0xa4] sm:$0xf]
  %v51 = vld [vmem:[%s0 + $0xa8] sm:$0xf]
  %v52 = vld [vmem:[%s0 + $0xac] sm:$0xf]
  %v53 = vld [vmem:[%s0 + $0xb0] sm:$0xf]
  %v54 = vld [vmem:[%s0 + $0xb4] sm:$0xf]
  %v55 = vld [vmem:[%s0 + $0xb8] sm:$0xf]
  %v56 = vld [vmem:[%s0 + $0xbc] sm:$0xf]
  %v57 = vld [vmem:[%s0 + $0xc0] sm:$0xf]
  %v58 = vld [vmem:[%s0 + $0xc4] sm:$0xf]
  %v59 = vld [vmem:[%s0 + $0xc8] sm:$0xf]
  %v60 = vld [vmem:[%s0 + $0xcc] sm:$0xf]
  %v61 = vld [vmem:[%s0 + $0xd0] sm:$0xf]
  %v62 = vld [vmem:[%s0 + $0xd4] sm:$0xf]
  %v63 = vld [vmem:[%s0 + $0xd8] sm:$0xf]
  %v64 = vld [vmem:[%s0 + $0xdc] sm:$0xf]
  %v65 = vld [vmem:[%s0 + $0xe0] sm:$0xf]
  %v66 = vld [vmem:[%s0 + $0xe4] sm:$0xf]
  %v67 = vld [vmem:[%s0 + $0xe8] sm:$0xf]
  %v68 = vld [vmem:[%s0 + $0xec] sm:$0xf]
  %v69 = vld [vmem:[%s0 + $0xf0] sm:$0xf]
  %v70 = vld [vmem:[%s0 + $0xf4] sm:$0xf]
  %v71 = vld [vmem:[%s0 + $0xf8] sm:$0xf]
  %v72 = vld [vmem:[%s0 + $0xfc] sm:$0xf]
  %v73 = vld [vmem:[%s0 + $0x100] sm:$0xf]
  %v74 = vld [vmem:[%s0 + $0x104] sm:$0xf]
  %v75 = vld [vmem:[%s0 + $0x108] sm:$0xf]
  %v76 = vld [vmem:[%s0 + $0x10c] sm:$0xf]
  %v77 = vld [vmem:[%s0 + $0x110] sm:$0xf]
  %v78 = vld [vmem:[%s0 + $0x114] sm:$0xf]
  %v79 = vld [vmem:[%s0 + $0x118] sm:$0xf]
  %v80 = vld [vmem:[%s0 + $0x11c] sm:$0xf]
  %v81 = vld [vmem:[%s0 + $0x120] sm:$0xf]
  %v82 = vld [vmem:[%s0 + $0x124] sm:$0xf]
  %v83 = vld [vmem:[%s0 + $0x128] sm:$0xf]
  %v84 = vld [vmem:[%s0 + $0x12c] sm:$0xf]
  %v85 = vld [vmem:[%s0 + $0x130] sm:$0xf]
  %v86 = vld [vmem:[%s0 + $0x134] sm:$0xf]
  %v87 = vld [vmem:[%s0 + $0x138] sm:$0xf]
  %v88 = vld [vmem:[%s0 + $0x13c] sm:$0xf]
  %v89 = vld [vmem:[%s0 + $0x140] sm:$0xf]
  %v90 = vld [vmem:[%s0 + $0x144] sm:$0xf]
  %v91 = vld [vmem:[%s0 + $0x148] sm:$0xf]
  %v92 = vld [vmem:[%s0 + $0x14c] sm:$0xf]
  %v93 = vld [vmem:[%s0 + $0x150] sm:$0xf]
  %v94 = vld [vmem:[%s0 + $0x154] sm:$0xf]
  %v95 = vld [vmem:[%s0 + $0x158] sm:$0xf]
  %v96 = vld [vmem:[%s0 + $0x15c] sm:$0xf]
  %v97 = vld [vmem:[%s0 + $0x160] sm:$0xf]
  %v98 = vld [vmem:[%s0 + $0x164] sm:$0xf]
  %v99 = vld [vmem:[%s0 + $0x168] sm:$0xf]
  %v100 = vld [vmem:[%s0 + $0x16c] sm:$0xf]
  %v101 = vld [vmem:[%s0 + $0x170] sm:$0xf]
  %v102 = vld [vmem:[%s0 + $0x174] sm:$0xf]
  %v103 = vld [vmem:[%s0 + $0x178] sm:$0xf]
  %v104 = vld [vmem:[%s0 + $0x17c] sm:$0xf]
  %v105 = vld [vmem:[%s0 + $0x180] sm:$0xf]
  %v106 = vld [vmem:[%s0 + $0x184] sm:$0xf]
  %v107 = vld [vmem:[%s0 + $0x188] sm:$0xf]
  %v108 = vld [vmem:[%s0 + $0x18c] sm:$0xf]
  %v109 = vld [vmem:[%s0 + $0x190] sm:$0xf]
  %v110 = vld [vmem:[%s0 + $0x194] sm:$0xf]
  %v111 = vld [vmem:[%s0 + $0x198] sm:$0xf]
  %v112 = vld [vmem:[%s0 + $0x19c] sm:$0xf]
  %v113 = vld [vmem:[%s0 + $0x1a0] sm:$0xf]
  %v114 = vld [vmem:[%s0 + $0x1a4] sm:$0xf]
  %v115 = vld [vmem:[%s0 + $0x1a8] sm:$0xf]
  %v116 = vld [vmem:[%s0 + $0x1ac] sm:$0xf]
  %v117 = vld [vmem:[%s0 + $0x1b0] sm:$0xf]
  %v118 = vld [vmem:[%s0 + $0x1b4] sm:$0xf]
  %v119 = vld [vmem:[%s0 + $0x1b8] sm:$0xf]
  %v120 = vld [vmem:[%s0 + $0x1bc] sm:$0xf]
  %v121 = vld [vmem:[%s0 + $0x1c0] sm:$0xf]
  %v122 = vld [vmem:[%s0 + $0x1c4] sm:$0xf]
  %v123 = vld [vmem:[%s0 + $0x1c8] sm:$0xf]
  %v124 = vld [vmem:[%s0 + $0x1cc] sm:$0xf]
  %v125 = vld [vmem:[%s0 + $0x1d0] sm:$0xf]
  %v126 = vld [vmem:[%s0 + $0x1d4] sm:$0xf]
  %v127 = vld [vmem:[%s0 + $0x1d8] sm:$0xf]
  %v128 = vld [vmem:[%s0 + $0x1dc] sm:$0xf]
  %v129 = vld [vmem:[%s0 + $0x1e0] sm:$0xf]
  %v130 = vld [vmem:[%s0 + $0x1e4] sm:$0xf]
  %v131 = vld [vmem:[%s0 + $0x1e8] sm:$0xf]
  %v132 = vld [vmem:[%s0 + $0x1ec] sm:$0xf]
  %v133 = vld [vmem:[%s0 + $0x1f0] sm:$0xf]
  %v134 = vld [vmem:[%s0 + $0x1f4] sm:$0xf]
  %v135 = vld [vmem:[%s0 + $0x1f8] sm:$0xf]
  %v136 = vld [vmem:[%s0 + $0x1fc] sm:$0xf]
  %v137 = vld [vmem:[%s0 + $0x200] sm:$0xf]
  %v138 = vld [vmem:[%s0 + $0x204] sm:$0xf]
  %v139 = vld [vmem:[%s0 + $0x208] sm:$0xf]
  %v140 = vld [vmem:[%s0 + $0x20c] sm:$0xf]
  %v141 = vld [vmem:[%s0 + $0x210] sm:$0xf]
  %v142 = vld [vmem:[%s0 + $0x214] sm:$0xf]
  %v143 = vld [vmem:[%s0 + $0x218] sm:$0xf]
  %v144 = vld [vmem:[%s0 + $0x21c] sm:$0xf]
  %v145 = vld [vmem:[%s0 + $0x220] sm:$0xf]
  %v146 = vld [vmem:[%s0 + $0x224] sm:$0xf]
  %v147 = vld [vmem:[%s0 + $0x228] sm:$0xf]
  %v148 = vld [vmem:[%s0 + $0x22c] sm:$0xf]
  %v149 = vld [vmem:[%s0 + $0x230] sm:$0xf]
  %v150 = vld [vmem:[%s0 + $0x234] sm:$0xf]
  %v151 = vld [vmem:[%s0 + $0x238] sm:$0xf]
  %v152 = vld [vmem:[%s0 + $0x23c] sm:$0xf]
  %vm153 = vcmask 1043456
  %v156 = vsel %vm153, %v9, 4286644096
  %v159 = vsel %vm153, %v25, 4286644096
  %v161 = vmax.bf16 %v156, %v159
  %v163 = vsel %vm153, %v41, 4286644096
  %v165 = vmax.bf16 %v161, %v163
  %v167 = vsel %vm153, %v57, 4286644096
  %v169 = vmax.bf16 %v165, %v167
  %v171 = vsel %vm153, %v73, 4286644096
  %v173 = vmax.bf16 %v169, %v171
  %v175 = vsel %vm153, %v89, 4286644096
  %v177 = vmax.bf16 %v173, %v175
  %v179 = vsel %vm153, %v105, 4286644096
  %v181 = vmax.bf16 %v177, %v179
  %v183 = vsel %vm153, %v121, 4286644096
  %v185 = vmax.bf16 %v181, %v183
  %v187 = vsel %vm153, %v137, 4286644096
  %v189 = vmax.bf16 %v185, %v187
  %v191 = vsel %vm153, %v10, 4286644096
  %v194 = vsel %vm153, %v26, 4286644096
  %v196 = vmax.bf16 %v191, %v194
  %v198 = vsel %vm153, %v42, 4286644096
  %v200 = vmax.bf16 %v196, %v198
  %v202 = vsel %vm153, %v58, 4286644096
  %v204 = vmax.bf16 %v200, %v202
  %v206 = vsel %vm153, %v74, 4286644096
  %v208 = vmax.bf16 %v204, %v206
  %v210 = vsel %vm153, %v90, 4286644096
  %v212 = vmax.bf16 %v208, %v210
  %v214 = vsel %vm153, %v106, 4286644096
  %v216 = vmax.bf16 %v212, %v214
  %v218 = vsel %vm153, %v122, 4286644096
  %v220 = vmax.bf16 %v216, %v218
  %v222 = vsel %vm153, %v138, 4286644096
  %v224 = vmax.bf16 %v220, %v222
  %v226 = vsel %vm153, %v11, 4286644096
  %v229 = vsel %vm153, %v27, 4286644096
  %v231 = vmax.bf16 %v226, %v229
  %v233 = vsel %vm153, %v43, 4286644096
  %v235 = vmax.bf16 %v231, %v233
  %v237 = vsel %vm153, %v59, 4286644096
  %v239 = vmax.bf16 %v235, %v237
  %v241 = vsel %vm153, %v75, 4286644096
  %v243 = vmax.bf16 %v239, %v241
  %v245 = vsel %vm153, %v91, 4286644096
  %v247 = vmax.bf16 %v243, %v245
  %v249 = vsel %vm153, %v107, 4286644096
  %v251 = vmax.bf16 %v247, %v249
  %v253 = vsel %vm153, %v123, 4286644096
  %v255 = vmax.bf16 %v251, %v253
  %v257 = vsel %vm153, %v139, 4286644096
  %v259 = vmax.bf16 %v255, %v257
  %v261 = vsel %vm153, %v12, 4286644096
  %v264 = vsel %vm153, %v28, 4286644096
  %v266 = vmax.bf16 %v261, %v264
  %v268 = vsel %vm153, %v44, 4286644096
  %v270 = vmax.bf16 %v266, %v268
  %v272 = vsel %vm153, %v60, 4286644096
  %v274 = vmax.bf16 %v270, %v272
  %v276 = vsel %vm153, %v76, 4286644096
  %v278 = vmax.bf16 %v274, %v276
  %v280 = vsel %vm153, %v92, 4286644096
  %v282 = vmax.bf16 %v278, %v280
  %v284 = vsel %vm153, %v108, 4286644096
  %v286 = vmax.bf16 %v282, %v284
  %v288 = vsel %vm153, %v124, 4286644096
  %v290 = vmax.bf16 %v286, %v288
  %v292 = vsel %vm153, %v140, 4286644096
  %v294 = vmax.bf16 %v290, %v292
  %v296 = vsel %vm153, %v13, 4286644096
  %v299 = vsel %vm153, %v29, 4286644096
  %v301 = vmax.bf16 %v296, %v299
  %v303 = vsel %vm153, %v45, 4286644096
  %v305 = vmax.bf16 %v301, %v303
  %v307 = vsel %vm153, %v61, 4286644096
  %v309 = vmax.bf16 %v305, %v307
  %v311 = vsel %vm153, %v77, 4286644096
  %v313 = vmax.bf16 %v309, %v311
  %v315 = vsel %vm153, %v93, 4286644096
  %v317 = vmax.bf16 %v313, %v315
  %v319 = vsel %vm153, %v109, 4286644096
  %v321 = vmax.bf16 %v317, %v319
  %v323 = vsel %vm153, %v125, 4286644096
  %v325 = vmax.bf16 %v321, %v323
  %v327 = vsel %vm153, %v141, 4286644096
  %v329 = vmax.bf16 %v325, %v327
  %v331 = vsel %vm153, %v14, 4286644096
  %v334 = vsel %vm153, %v30, 4286644096
  %v336 = vmax.bf16 %v331, %v334
  %v338 = vsel %vm153, %v46, 4286644096
  %v340 = vmax.bf16 %v336, %v338
  %v342 = vsel %vm153, %v62, 4286644096
  %v344 = vmax.bf16 %v340, %v342
  %v346 = vsel %vm153, %v78, 4286644096
  %v348 = vmax.bf16 %v344, %v346
  %v350 = vsel %vm153, %v94, 4286644096
  %v352 = vmax.bf16 %v348, %v350
  %v354 = vsel %vm153, %v110, 4286644096
  %v356 = vmax.bf16 %v352, %v354
  %v358 = vsel %vm153, %v126, 4286644096
  %v360 = vmax.bf16 %v356, %v358
  %v362 = vsel %vm153, %v142, 4286644096
  %v364 = vmax.bf16 %v360, %v362
  %v366 = vsel %vm153, %v15, 4286644096
  %v369 = vsel %vm153, %v31, 4286644096
  %v371 = vmax.bf16 %v366, %v369
  %v373 = vsel %vm153, %v47, 4286644096
  %v375 = vmax.bf16 %v371, %v373
  %v377 = vsel %vm153, %v63, 4286644096
  %v379 = vmax.bf16 %v375, %v377
  %v381 = vsel %vm153, %v79, 4286644096
  %v383 = vmax.bf16 %v379, %v381
  %v385 = vsel %vm153, %v95, 4286644096
  %v387 = vmax.bf16 %v383, %v385
  %v389 = vsel %vm153, %v111, 4286644096
  %v391 = vmax.bf16 %v387, %v389
  %v393 = vsel %vm153, %v127, 4286644096
  %v395 = vmax.bf16 %v391, %v393
  %v397 = vsel %vm153, %v143, 4286644096
  %v399 = vmax.bf16 %v395, %v397
  %v401 = vsel %vm153, %v16, 4286644096
  %v404 = vsel %vm153, %v32, 4286644096
  %v406 = vmax.bf16 %v401, %v404
  %v408 = vsel %vm153, %v48, 4286644096
  %v410 = vmax.bf16 %v406, %v408
  %v412 = vsel %vm153, %v64, 4286644096
  %v414 = vmax.bf16 %v410, %v412
  %v416 = vsel %vm153, %v80, 4286644096
  %v418 = vmax.bf16 %v414, %v416
  %v420 = vsel %vm153, %v96, 4286644096
  %v422 = vmax.bf16 %v418, %v420
  %v424 = vsel %vm153, %v112, 4286644096
  %v426 = vmax.bf16 %v422, %v424
  %v428 = vsel %vm153, %v128, 4286644096
  %v430 = vmax.bf16 %v426, %v428
  %v432 = vsel %vm153, %v144, 4286644096
  %v434 = vmax.bf16 %v430, %v432
  %v436 = vsel %vm153, %v17, 4286644096
  %v439 = vsel %vm153, %v33, 4286644096
  %v441 = vmax.bf16 %v436, %v439
  %v443 = vsel %vm153, %v49, 4286644096
  %v445 = vmax.bf16 %v441, %v443
  %v447 = vsel %vm153, %v65, 4286644096
  %v449 = vmax.bf16 %v445, %v447
  %v451 = vsel %vm153, %v81, 4286644096
  %v453 = vmax.bf16 %v449, %v451
  %v455 = vsel %vm153, %v97, 4286644096
  %v457 = vmax.bf16 %v453, %v455
  %v459 = vsel %vm153, %v113, 4286644096
  %v461 = vmax.bf16 %v457, %v459
  %v463 = vsel %vm153, %v129, 4286644096
  %v465 = vmax.bf16 %v461, %v463
  %v467 = vsel %vm153, %v145, 4286644096
  %v469 = vmax.bf16 %v465, %v467
  %v471 = vsel %vm153, %v18, 4286644096
  %v474 = vsel %vm153, %v34, 4286644096
  %v476 = vmax.bf16 %v471, %v474
  %v478 = vsel %vm153, %v50, 4286644096
  %v480 = vmax.bf16 %v476, %v478
  %v482 = vsel %vm153, %v66, 4286644096
  %v484 = vmax.bf16 %v480, %v482
  %v486 = vsel %vm153, %v82, 4286644096
  %v488 = vmax.bf16 %v484, %v486
  %v490 = vsel %vm153, %v98, 4286644096
  %v492 = vmax.bf16 %v488, %v490
  %v494 = vsel %vm153, %v114, 4286644096
  %v496 = vmax.bf16 %v492, %v494
  %v498 = vsel %vm153, %v130, 4286644096
  %v500 = vmax.bf16 %v496, %v498
  %v502 = vsel %vm153, %v146, 4286644096
  %v504 = vmax.bf16 %v500, %v502
  %v506 = vsel %vm153, %v19, 4286644096
  %v509 = vsel %vm153, %v35, 4286644096
  %v511 = vmax.bf16 %v506, %v509
  %v513 = vsel %vm153, %v51, 4286644096
  %v515 = vmax.bf16 %v511, %v513
  %v517 = vsel %vm153, %v67, 4286644096
  %v519 = vmax.bf16 %v515, %v517
  %v521 = vsel %vm153, %v83, 4286644096
  %v523 = vmax.bf16 %v519, %v521
  %v525 = vsel %vm153, %v99, 4286644096
  %v527 = vmax.bf16 %v523, %v525
  %v529 = vsel %vm153, %v115, 4286644096
  %v531 = vmax.bf16 %v527, %v529
  %v533 = vsel %vm153, %v131, 4286644096
  %v535 = vmax.bf16 %v531, %v533
  %v537 = vsel %vm153, %v147, 4286644096
  %v539 = vmax.bf16 %v535, %v537
  %v541 = vsel %vm153, %v20, 4286644096
  %v544 = vsel %vm153, %v36, 4286644096
  %v546 = vmax.bf16 %v541, %v544
  %v548 = vsel %vm153, %v52, 4286644096
  %v550 = vmax.bf16 %v546, %v548
  %v552 = vsel %vm153, %v68, 4286644096
  %v554 = vmax.bf16 %v550, %v552
  %v556 = vsel %vm153, %v84, 4286644096
  %v558 = vmax.bf16 %v554, %v556
  %v560 = vsel %vm153, %v100, 4286644096
  %v562 = vmax.bf16 %v558, %v560
  %v564 = vsel %vm153, %v116, 4286644096
  %v566 = vmax.bf16 %v562, %v564
  %v568 = vsel %vm153, %v132, 4286644096
  %v570 = vmax.bf16 %v566, %v568
  %v572 = vsel %vm153, %v148, 4286644096
  %v574 = vmax.bf16 %v570, %v572
  %v576 = vsel %vm153, %v21, 4286644096
  %v579 = vsel %vm153, %v37, 4286644096
  %v581 = vmax.bf16 %v576, %v579
  %v583 = vsel %vm153, %v53, 4286644096
  %v585 = vmax.bf16 %v581, %v583
  %v587 = vsel %vm153, %v69, 4286644096
  %v589 = vmax.bf16 %v585, %v587
  %v591 = vsel %vm153, %v85, 4286644096
  %v593 = vmax.bf16 %v589, %v591
  %v595 = vsel %vm153, %v101, 4286644096
  %v597 = vmax.bf16 %v593, %v595
  %v599 = vsel %vm153, %v117, 4286644096
  %v601 = vmax.bf16 %v597, %v599
  %v603 = vsel %vm153, %v133, 4286644096
  %v605 = vmax.bf16 %v601, %v603
  %v607 = vsel %vm153, %v149, 4286644096
  %v609 = vmax.bf16 %v605, %v607
  %v611 = vsel %vm153, %v22, 4286644096
  %v614 = vsel %vm153, %v38, 4286644096
  %v616 = vmax.bf16 %v611, %v614
  %v618 = vsel %vm153, %v54, 4286644096
  %v620 = vmax.bf16 %v616, %v618
  %v622 = vsel %vm153, %v70, 4286644096
  %v624 = vmax.bf16 %v620, %v622
  %v626 = vsel %vm153, %v86, 4286644096
  %v628 = vmax.bf16 %v624, %v626
  %v630 = vsel %vm153, %v102, 4286644096
  %v632 = vmax.bf16 %v628, %v630
  %v634 = vsel %vm153, %v118, 4286644096
  %v636 = vmax.bf16 %v632, %v634
  %v638 = vsel %vm153, %v134, 4286644096
  %v640 = vmax.bf16 %v636, %v638
  %v642 = vsel %vm153, %v150, 4286644096
  %v644 = vmax.bf16 %v640, %v642
  %v646 = vsel %vm153, %v23, 4286644096
  %v649 = vsel %vm153, %v39, 4286644096
  %v651 = vmax.bf16 %v646, %v649
  %v653 = vsel %vm153, %v55, 4286644096
  %v655 = vmax.bf16 %v651, %v653
  %v657 = vsel %vm153, %v71, 4286644096
  %v659 = vmax.bf16 %v655, %v657
  %v661 = vsel %vm153, %v87, 4286644096
  %v663 = vmax.bf16 %v659, %v661
  %v665 = vsel %vm153, %v103, 4286644096
  %v667 = vmax.bf16 %v663, %v665
  %v669 = vsel %vm153, %v119, 4286644096
  %v671 = vmax.bf16 %v667, %v669
  %v673 = vsel %vm153, %v135, 4286644096
  %v675 = vmax.bf16 %v671, %v673
  %v677 = vsel %vm153, %v151, 4286644096
  %v679 = vmax.bf16 %v675, %v677
  %v681 = vsel %vm153, %v24, 4286644096
  %v684 = vsel %vm153, %v40, 4286644096
  %v686 = vmax.bf16 %v681, %v684
  %v688 = vsel %vm153, %v56, 4286644096
  %v690 = vmax.bf16 %v686, %v688
  %v692 = vsel %vm153, %v72, 4286644096
  %v694 = vmax.bf16 %v690, %v692
  %v696 = vsel %vm153, %v88, 4286644096
  %v698 = vmax.bf16 %v694, %v696
  %v700 = vsel %vm153, %v104, 4286644096
  %v702 = vmax.bf16 %v698, %v700
  %v704 = vsel %vm153, %v120, 4286644096
  %v706 = vmax.bf16 %v702, %v704
  %v708 = vsel %vm153, %v136, 4286644096
  %v710 = vmax.bf16 %v706, %v708
  %v712 = vsel %vm153, %v152, 4286644096
  %v714 = vmax.bf16 %v710, %v712
  %715 = vst [vmem:[%s1] sm:$0xf] %v189
  %716 = vst [vmem:[%s1 + $0x4] sm:$0xf] %v224
  %717 = vst [vmem:[%s1 + $0x8] sm:$0xf] %v259
  %718 = vst [vmem:[%s1 + $0xc] sm:$0xf] %v294
  %719 = vst [vmem:[%s1 + $0x10] sm:$0xf] %v329
  %720 = vst [vmem:[%s1 + $0x14] sm:$0xf] %v364
  %721 = vst [vmem:[%s1 + $0x18] sm:$0xf] %v399
  %722 = vst [vmem:[%s1 + $0x1c] sm:$0xf] %v434
  %723 = vst [vmem:[%s1 + $0x20] sm:$0xf] %v469
  %724 = vst [vmem:[%s1 + $0x24] sm:$0xf] %v504
  %725 = vst [vmem:[%s1 + $0x28] sm:$0xf] %v539
  %726 = vst [vmem:[%s1 + $0x2c] sm:$0xf] %v574
  %727 = vst [vmem:[%s1 + $0x30] sm:$0xf] %v609
  %728 = vst [vmem:[%s1 + $0x34] sm:$0xf] %v644
  %729 = vst [vmem:[%s1 + $0x38] sm:$0xf] %v679
  %730 = vst [vmem:[%s1 + $0x3c] sm:$0xf] %v714
  // Predicated region
  $region6: #{osnet_reid_forward.7} parent=0 // pred_check
    _
  $region7: #{osnet_reid_forward.7} parent=0 // pred_check_branch
    %732 = sbr.rel (0) target = $region9
  $region8: #{osnet_reid_forward.7} parent=0 // pred_region
    _
  $region9: #{osnet_reid_forward.7} parent=0 // pred_fallthru
    _
  // Predicated region
  $region10: #{osnet_reid_forward.7} parent=0 // pred_check
    _
  $region11: #{osnet_reid_forward.7} parent=0 // pred_check_branch
    %734 = sbr.rel (0) target = $region13
  $region12: #{osnet_reid_forward.7} parent=0 // pred_region
    _
  $region13: #{osnet_reid_forward.7} parent=0 // pred_fallthru
    _

// kernel: osnet_reid_forward.8
$region0: #{osnet_reid_forward.8}
  #allocation0 [shape = 'u32[]', space=smem, size = 0x4, offset = 0x4, fixed_abs, tag = 'smem constant byte address 0x4 - core index']
  #allocation1 [shape = 'u32[144,128]{1,0:T(1,128)}', space=vmem, size = 0x12000, scoped, tag = 'internal scratch']
  %s0 = inlined_call_operand.vmem [shape: bf16[128,128], index: 0, kind: input, shape index: {}]
  %s1 = inlined_call_operand.vmem [shape: bf16[128,128], index: 1, kind: input, shape index: {}]
  %s2 = inlined_call_operand.vmem [shape: f32[1,128], index: 2, kind: input, shape index: {}]
  %s3 = inlined_call_operand.vmem [shape: bf16[128,128], index: 3, kind: output, shape index: {}]
  %s4 = sld [smem:[#allocation0]]
  $region22: #{osnet_reid_forward.8} parent=0
    _
  %s6 = ssub.s32 1, %s4
  %s7 = scalar_select 0, %s6, %s4
  // Predicated region
  $region2: #{osnet_reid_forward.8} parent=0 // pred_check
    _
  $region3: #{osnet_reid_forward.8} parent=0 // pred_check_branch
    %9 = sbr.rel (0) target = $region5
  $region4: #{osnet_reid_forward.8} parent=0 // pred_region
    _
  $region5: #{osnet_reid_forward.8} parent=0 // pred_fallthru
    _
  // Predicated region
  $region6: #{osnet_reid_forward.8} parent=0 // pred_check
    _
  $region7: #{osnet_reid_forward.8} parent=0 // pred_check_branch
    %11 = sbr.rel (0) target = $region9
  $region8: #{osnet_reid_forward.8} parent=0 // pred_region
    _
  $region9: #{osnet_reid_forward.8} parent=0 // pred_fallthru
    _
  // Predicated region
  $region10: #{osnet_reid_forward.8} parent=0 // pred_check
    _
  $region11: #{osnet_reid_forward.8} parent=0 // pred_check_branch
    %13 = sbr.rel (0) target = $region13
  $region12: #{osnet_reid_forward.8} parent=0 // pred_region
    _
  $region13: #{osnet_reid_forward.8} parent=0 // pred_fallthru
    _
  %v15 = vld [vmem:[%s0] sm:$0xf]
  %v16 = vld [vmem:[%s0 + $0x4] sm:$0xf]
  %v17 = vld [vmem:[%s0 + $0x8] sm:$0xf]
  %v18 = vld [vmem:[%s0 + $0xc] sm:$0xf]
  %v19 = vld [vmem:[%s0 + $0x10] sm:$0xf]
  %v20 = vld [vmem:[%s0 + $0x14] sm:$0xf]
  %v21 = vld [vmem:[%s0 + $0x18] sm:$0xf]
  %v22 = vld [vmem:[%s0 + $0x1c] sm:$0xf]
  %v23 = vld [vmem:[%s0 + $0x20] sm:$0xf]
  %v24 = vld [vmem:[%s0 + $0x24] sm:$0xf]
  %v25 = vld [vmem:[%s0 + $0x28] sm:$0xf]
  %v26 = vld [vmem:[%s0 + $0x2c] sm:$0xf]
  %v27 = vld [vmem:[%s0 + $0x30] sm:$0xf]
  %v28 = vld [vmem:[%s0 + $0x34] sm:$0xf]
  %v29 = vld [vmem:[%s0 + $0x38] sm:$0xf]
  %v30 = vld [vmem:[%s0 + $0x3c] sm:$0xf]
  %v31 = vld [vmem:[%s1] sm:$0xf]
  %v32 = vld [vmem:[%s1 + $0x4] sm:$0xf]
  %v33 = vld [vmem:[%s1 + $0x8] sm:$0xf]
  %v34 = vld [vmem:[%s1 + $0xc] sm:$0xf]
  %v35 = vld [vmem:[%s1 + $0x10] sm:$0xf]
  %v36 = vld [vmem:[%s1 + $0x14] sm:$0xf]
  %v37 = vld [vmem:[%s1 + $0x18] sm:$0xf]
  %v38 = vld [vmem:[%s1 + $0x1c] sm:$0xf]
  %v39 = vld [vmem:[%s1 + $0x20] sm:$0xf]
  %v40 = vld [vmem:[%s1 + $0x24] sm:$0xf]
  %v41 = vld [vmem:[%s1 + $0x28] sm:$0xf]
  %v42 = vld [vmem:[%s1 + $0x2c] sm:$0xf]
  %v43 = vld [vmem:[%s1 + $0x30] sm:$0xf]
  %v44 = vld [vmem:[%s1 + $0x34] sm:$0xf]
  %v45 = vld [vmem:[%s1 + $0x38] sm:$0xf]
  %v46 = vld [vmem:[%s1 + $0x3c] sm:$0xf]
  %v47 = vld [vmem:[%s2] sm:$0x1]
  %v49 = vlaneseq
  %v50 = vshrl.u32 %v49, 7
  %v51 = vsub.s32 0, %v50
  %v52 = vrot.slane %v47, %v51
  %v70 = vunpack.c.l.b16 %v15
  %v71 = vunpack.c.l.b16 %v16
  %v72 = vunpack.c.l.b16 %v17
  %v73 = vunpack.c.l.b16 %v18
  %v74 = vunpack.c.l.b16 %v19
  %v75 = vunpack.c.l.b16 %v20
  %v76 = vunpack.c.l.b16 %v21
  %v77 = vunpack.c.l.b16 %v22
  %v78 = vunpack.c.l.b16 %v23
  %v79 = vunpack.c.l.b16 %v24
  %v80 = vunpack.c.l.b16 %v25
  %v81 = vunpack.c.l.b16 %v26
  %v82 = vunpack.c.l.b16 %v27
  %v83 = vunpack.c.l.b16 %v28
  %v84 = vunpack.c.l.b16 %v29
  %v85 = vunpack.c.l.b16 %v30
  %v86 = vpack.c.b16 %v71, %v70
  %v87 = vpack.c.b16 %v73, %v72
  %v88 = vpack.c.b16 %v75, %v74
  %v89 = vpack.c.b16 %v77, %v76
  %v90 = vpack.c.b16 %v79, %v78
  %v91 = vpack.c.b16 %v81, %v80
  %v92 = vpack.c.b16 %v83, %v82
  %v93 = vpack.c.b16 %v85, %v84
  %v118 = vunpack.c.l.b16 %v31
  %v119 = vunpack.c.l.b16 %v32
  %v120 = vunpack.c.l.b16 %v33
  %v121 = vunpack.c.l.b16 %v34
  %v122 = vunpack.c.l.b16 %v35
  %v123 = vunpack.c.l.b16 %v36
  %v124 = vunpack.c.l.b16 %v37
  %v125 = vunpack.c.l.b16 %v38
  %v126 = vunpack.c.l.b16 %v39
  %v127 = vunpack.c.l.b16 %v40
  %v128 = vunpack.c.l.b16 %v41
  %v129 = vunpack.c.l.b16 %v42
  %v130 = vunpack.c.l.b16 %v43
  %v131 = vunpack.c.l.b16 %v44
  %v132 = vunpack.c.l.b16 %v45
  %v133 = vunpack.c.l.b16 %v46
  %v134 = vpack.c.b16 %v119, %v118
  %v135 = vpack.c.b16 %v121, %v120
  %v136 = vpack.c.b16 %v123, %v122
  %v137 = vpack.c.b16 %v125, %v124
  %v138 = vpack.c.b16 %v127, %v126
  %v139 = vpack.c.b16 %v129, %v128
  %v140 = vpack.c.b16 %v131, %v130
  %v141 = vpack.c.b16 %v133, %v132
  %150 = vmatprep.subr.bf16.mxu0 0
  %151 = vmatpush1.bf16.msra.mxu0 %v141
  %152 = vmatprep.subr.bf16.mxu0 0
  %153 = vmatpush1.bf16.msra.mxu0 %v140
  %154 = vmatprep.subr.bf16.mxu0 0
  %155 = vmatpush1.bf16.msra.mxu0 %v139
  %156 = vmatprep.subr.bf16.mxu0 0
  %157 = vmatpush1.bf16.msra.mxu0 %v138
  %158 = vmatprep.subr.bf16.mxu0 0
  %159 = vmatpush1.bf16.msra.mxu0 %v137
  %160 = vmatprep.subr.bf16.mxu0 0
  %161 = vmatpush1.bf16.msra.mxu0 %v136
  %162 = vmatprep.subr.bf16.mxu0 0
  %163 = vmatpush1.bf16.msra.mxu0 %v135
  %164 = vmatprep.subr.bf16.mxu0 0
  %165 = vmatpush1.bf16.msra.mxu0 %v134
  %166 = vmatprep.subr.bf16.mxu0 0
  %167 = vmatpush2.bf16.msra.mxu0 0
  %168 = vmatprep.subr.bf16.mxu0 0
  %169 = vmatpush2.bf16.msra.mxu0 0
  %170 = vmatprep.subr.bf16.mxu0 0
  %171 = vmatpush2.bf16.msra.mxu0 0
  %172 = vmatprep.subr.bf16.mxu0 0
  %173 = vmatpush2.bf16.msra.mxu0 0
  %174 = vmatprep.subr.bf16.mxu0 0
  %175 = vmatpush2.bf16.msra.mxu0 0
  %176 = vmatprep.subr.bf16.mxu0 0
  %177 = vmatpush2.bf16.msra.mxu0 0
  %178 = vmatprep.subr.bf16.mxu0 0
  %179 = vmatpush2.bf16.msra.mxu0 0
  %180 = vmatprep.subr.bf16.mxu0 0
  %181 = vmatpush2.bf16.msra.mxu0 0
  %182 = vmatprep.mubr.bf16.mxu0 0
  %183 = vmatmul.mubr.bf16.gmra.mxu0 %v86
  %v184 = vpop.f32.mrf.mxu0
  %v185 = vadd.f32 %v52, %v184
  %v186 = vpop.f32.mrf.mxu0
  %v187 = vpop.f32.mrf.mxu0
  %v188 = vadd.f32 %v52, %v187
  %v189 = vpop.f32.mrf.mxu0
  %190 = vmatprep.mubr.bf16.mxu0 0
  %191 = vmatmul.mubr.bf16.gmra.mxu0 %v87
  %v192 = vpop.f32.mrf.mxu0
  %v193 = vadd.f32 %v52, %v192
  %v194 = vpop.f32.mrf.mxu0
  %v195 = vpop.f32.mrf.mxu0
  %v196 = vadd.f32 %v52, %v195
  %v197 = vpop.f32.mrf.mxu0
  %198 = vmatprep.mubr.bf16.mxu0 0
  %199 = vmatmul.mubr.bf16.gmra.mxu0 %v88
  %v200 = vpop.f32.mrf.mxu0
  %v201 = vadd.f32 %v52, %v200
  %v202 = vpop.f32.mrf.mxu0
  %v203 = vpop.f32.mrf.mxu0
  %v204 = vadd.f32 %v52, %v203
  %v205 = vpop.f32.mrf.mxu0
  %206 = vmatprep.mubr.bf16.mxu0 0
  %207 = vmatmul.mubr.bf16.gmra.mxu0 %v89
  %v208 = vpop.f32.mrf.mxu0
  %v209 = vadd.f32 %v52, %v208
  %v210 = vpop.f32.mrf.mxu0
  %v211 = vpop.f32.mrf.mxu0
  %v212 = vadd.f32 %v52, %v211
  %v213 = vpop.f32.mrf.mxu0
  %214 = vmatprep.mubr.bf16.mxu0 0
  %215 = vmatmul.mubr.bf16.gmra.mxu0 %v90
  %v216 = vpop.f32.mrf.mxu0
  %v217 = vadd.f32 %v52, %v216
  %v218 = vpop.f32.mrf.mxu0
  %v219 = vpop.f32.mrf.mxu0
  %v220 = vadd.f32 %v52, %v219
  %v221 = vpop.f32.mrf.mxu0
  %222 = vmatprep.mubr.bf16.mxu0 0
  %223 = vmatmul.mubr.bf16.gmra.mxu0 %v91
  %v224 = vpop.f32.mrf.mxu0
  %v225 = vadd.f32 %v52, %v224
  %v226 = vpop.f32.mrf.mxu0
  %v227 = vpop.f32.mrf.mxu0
  %v228 = vadd.f32 %v52, %v227
  %v229 = vpop.f32.mrf.mxu0
  %230 = vmatprep.mubr.bf16.mxu0 0
  %231 = vmatmul.mubr.bf16.gmra.mxu0 %v92
  %v232 = vpop.f32.mrf.mxu0
  %v233 = vadd.f32 %v52, %v232
  %v234 = vpop.f32.mrf.mxu0
  %v235 = vpop.f32.mrf.mxu0
  %v236 = vadd.f32 %v52, %v235
  %v237 = vpop.f32.mrf.mxu0
  %238 = vmatprep.mubr.bf16.mxu0 0
  %239 = vmatmul.mubr.bf16.gmra.mxu0 %v93
  %v240 = vpop.f32.mrf.mxu0
  %v241 = vadd.f32 %v52, %v240
  %v242 = vpop.f32.mrf.mxu0
  %v243 = vpop.f32.mrf.mxu0
  %v244 = vadd.f32 %v52, %v243
  %v245 = vpop.f32.mrf.mxu0
  %246 = vdwg.mxu0
  %v247 = vmax.f32 %v185, 0.0
  %v248 = vmax.f32 %v188, 0.0
  %v249 = vmax.f32 %v193, 0.0
  %v250 = vmax.f32 %v196, 0.0
  %v251 = vmax.f32 %v201, 0.0
  %v252 = vmax.f32 %v204, 0.0
  %v253 = vmax.f32 %v209, 0.0
  %v254 = vmax.f32 %v212, 0.0
  %v255 = vmax.f32 %v217, 0.0
  %v256 = vmax.f32 %v220, 0.0
  %v257 = vmax.f32 %v225, 0.0
  %v258 = vmax.f32 %v228, 0.0
  %v259 = vmax.f32 %v233, 0.0
  %v260 = vmax.f32 %v236, 0.0
  %v261 = vmax.f32 %v241, 0.0
  %v262 = vmax.f32 %v244, 0.0
  %v263 = vpack.c.bf16 %v248, %v247
  %v264 = vpack.c.bf16 %v250, %v249
  %v265 = vpack.c.bf16 %v252, %v251
  %v266 = vpack.c.bf16 %v254, %v253
  %v267 = vpack.c.bf16 %v256, %v255
  %v268 = vpack.c.bf16 %v258, %v257
  %v269 = vpack.c.bf16 %v260, %v259
  %v270 = vpack.c.bf16 %v262, %v261
  %v279 = vunpack.c.l.b16 %v263
  %v280 = vunpack.c.h.b16 %v263
  %v281 = vunpack.c.l.b16 %v264
  %v282 = vunpack.c.h.b16 %v264
  %v283 = vunpack.c.l.b16 %v265
  %v284 = vunpack.c.h.b16 %v265
  %v285 = vunpack.c.l.b16 %v266
  %v286 = vunpack.c.h.b16 %v266
  %v287 = vunpack.c.l.b16 %v267
  %v288 = vunpack.c.h.b16 %v267
  %v289 = vunpack.c.l.b16 %v268
  %v290 = vunpack.c.h.b16 %v268
  %v291 = vunpack.c.l.b16 %v269
  %v292 = vunpack.c.h.b16 %v269
  %v293 = vunpack.c.l.b16 %v270
  %v294 = vunpack.c.h.b16 %v270
  %v295 = vpack.c.b16 %v279, %v279
  %v296 = vpack.c.b16 %v280, %v280
  %v297 = vpack.c.b16 %v281, %v281
  %v298 = vpack.c.b16 %v282, %v282
  %v299 = vpack.c.b16 %v283, %v283
  %v300 = vpack.c.b16 %v284, %v284
  %v301 = vpack.c.b16 %v285, %v285
  %v302 = vpack.c.b16 %v286, %v286
  %v303 = vpack.c.b16 %v287, %v287
  %v304 = vpack.c.b16 %v288, %v288
  %v305 = vpack.c.b16 %v289, %v289
  %v306 = vpack.c.b16 %v290, %v290
  %v307 = vpack.c.b16 %v291, %v291
  %v308 = vpack.c.b16 %v292, %v292
  %v309 = vpack.c.b16 %v293, %v293
  %v310 = vpack.c.b16 %v294, %v294
  %327 = vst [vmem:[%s3] sm:$0xf] %v295
  %328 = vst [vmem:[%s3 + $0x4] sm:$0xf] %v296
  %329 = vst [vmem:[%s3 + $0x8] sm:$0xf] %v297
  %330 = vst [vmem:[%s3 + $0xc] sm:$0xf] %v298
  %331 = vst [vmem:[%s3 + $0x10] sm:$0xf] %v299
  %332 = vst [vmem:[%s3 + $0x14] sm:$0xf] %v300
  %333 = vst [vmem:[%s3 + $0x18] sm:$0xf] %v301
  %334 = vst [vmem:[%s3 + $0x1c] sm:$0xf] %v302
  %335 = vst [vmem:[%s3 + $0x20] sm:$0xf] %v303
  %336 = vst [vmem:[%s3 + $0x24] sm:$0xf] %v304
  %337 = vst [vmem:[%s3 + $0x28] sm:$0xf] %v305
  %338 = vst [vmem:[%s3 + $0x2c] sm:$0xf] %v306
  %339 = vst [vmem:[%s3 + $0x30] sm:$0xf] %v307
  %340 = vst [vmem:[%s3 + $0x34] sm:$0xf] %v308
  %341 = vst [vmem:[%s3 + $0x38] sm:$0xf] %v309
  %342 = vst [vmem:[%s3 + $0x3c] sm:$0xf] %v310
  // Predicated region
  $region14: #{osnet_reid_forward.8} parent=0 // pred_check
    _
  $region15: #{osnet_reid_forward.8} parent=0 // pred_check_branch
    %344 = sbr.rel (0) target = $region17
  $region16: #{osnet_reid_forward.8} parent=0 // pred_region
    _
  $region17: #{osnet_reid_forward.8} parent=0 // pred_fallthru
    _
  // Predicated region
  $region18: #{osnet_reid_forward.8} parent=0 // pred_check
    _
  $region19: #{osnet_reid_forward.8} parent=0 // pred_check_branch
    %346 = sbr.rel (0) target = $region21
  $region20: #{osnet_reid_forward.8} parent=0 // pred_region
    _
  $region21: #{osnet_reid_forward.8} parent=0 // pred_fallthru
    _

// kernel: osnet_reid_forward.9
$region0: #{osnet_reid_forward.9}
  #allocation0 [shape = 'u32[]', space=smem, size = 0x4, offset = 0x4, fixed_abs, tag = 'smem constant byte address 0x4 - core index']
  #allocation1 [shape = 'u32[144,128]{1,0:T(1,128)}', space=vmem, size = 0x12000, scoped, tag = 'internal scratch']
  %s0 = inlined_call_operand.vmem [shape: bf16[32,256], index: 0, kind: input, shape index: {}]
  %s1 = inlined_call_operand.vmem [shape: bf16[256,128], index: 1, kind: input, shape index: {}]
  %s2 = inlined_call_operand.vmem [shape: f32[1,128], index: 2, kind: input, shape index: {}]
  %s3 = inlined_call_operand.vmem [shape: bf16[32,128], index: 3, kind: output, shape index: {}]
  %s4 = sld [smem:[#allocation0]]
  $region22: #{osnet_reid_forward.9} parent=0
    _
  %s6 = ssub.s32 1, %s4
  %s7 = scalar_select 0, %s6, %s4
  // Predicated region
  $region2: #{osnet_reid_forward.9} parent=0 // pred_check
    _
  $region3: #{osnet_reid_forward.9} parent=0 // pred_check_branch
    %9 = sbr.rel (0) target = $region5
  $region4: #{osnet_reid_forward.9} parent=0 // pred_region
    _
  $region5: #{osnet_reid_forward.9} parent=0 // pred_fallthru
    _
  // Predicated region
  $region6: #{osnet_reid_forward.9} parent=0 // pred_check
    _
  $region7: #{osnet_reid_forward.9} parent=0 // pred_check_branch
    %11 = sbr.rel (0) target = $region9
  $region8: #{osnet_reid_forward.9} parent=0 // pred_region
    _
  $region9: #{osnet_reid_forward.9} parent=0 // pred_fallthru
    _
  // Predicated region
  $region10: #{osnet_reid_forward.9} parent=0 // pred_check
    _
  $region11: #{osnet_reid_forward.9} parent=0 // pred_check_branch
    %13 = sbr.rel (0) target = $region13
  $region12: #{osnet_reid_forward.9} parent=0 // pred_region
    _
  $region13: #{osnet_reid_forward.9} parent=0 // pred_fallthru
    _
  %v15 = vld [vmem:[%s0] sm:$0xff]
  %v16 = vld [vmem:[%s0 + $0x8] sm:$0xff]
  %v17 = vld [vmem:[%s0 + $0x10] sm:$0xff]
  %v18 = vld [vmem:[%s0 + $0x18] sm:$0xff]
  %v19 = vld [vmem:[%s1] sm:$0xf]
  %v20 = vld [vmem:[%s1 + $0x4] sm:$0xf]
  %v21 = vld [vmem:[%s1 + $0x8] sm:$0xf]
  %v22 = vld [vmem:[%s1 + $0xc] sm:$0xf]
  %v23 = vld [vmem:[%s1 + $0x10] sm:$0xf]
  %v24 = vld [vmem:[%s1 + $0x14] sm:$0xf]
  %v25 = vld [vmem:[%s1 + $0x18] sm:$0xf]
  %v26 = vld [vmem:[%s1 + $0x1c] sm:$0xf]
  %v27 = vld [vmem:[%s1 + $0x20] sm:$0xf]
  %v28 = vld [vmem:[%s1 + $0x24] sm:$0xf]
  %v29 = vld [vmem:[%s1 + $0x28] sm:$0xf]
  %v30 = vld [vmem:[%s1 + $0x2c] sm:$0xf]
  %v31 = vld [vmem:[%s1 + $0x30] sm:$0xf]
  %v32 = vld [vmem:[%s1 + $0x34] sm:$0xf]
  %v33 = vld [vmem:[%s1 + $0x38] sm:$0xf]
  %v34 = vld [vmem:[%s1 + $0x3c] sm:$0xf]
  %v35 = vld [vmem:[%s1 + $0x40] sm:$0xf]
  %v36 = vld [vmem:[%s1 + $0x44] sm:$0xf]
  %v37 = vld [vmem:[%s1 + $0x48] sm:$0xf]
  %v38 = vld [vmem:[%s1 + $0x4c] sm:$0xf]
  %v39 = vld [vmem:[%s1 + $0x50] sm:$0xf]
  %v40 = vld [vmem:[%s1 + $0x54] sm:$0xf]
  %v41 = vld [vmem:[%s1 + $0x58] sm:$0xf]
  %v42 = vld [vmem:[%s1 + $0x5c] sm:$0xf]
  %v43 = vld [vmem:[%s1 + $0x60] sm:$0xf]
  %v44 = vld [vmem:[%s1 + $0x64] sm:$0xf]
  %v45 = vld [vmem:[%s1 + $0x68] sm:$0xf]
  %v46 = vld [vmem:[%s1 + $0x6c] sm:$0xf]
  %v47 = vld [vmem:[%s1 + $0x70] sm:$0xf]
  %v48 = vld [vmem:[%s1 + $0x74] sm:$0xf]
  %v49 = vld [vmem:[%s1 + $0x78] sm:$0xf]
  %v50 = vld [vmem:[%s1 + $0x7c] sm:$0xf]
  %v51 = vld [vmem:[%s2] sm:$0x1]
  %v53 = vlaneseq
  %v54 = vshrl.u32 %v53, 7
  %v55 = vsub.s32 0, %v54
  %v56 = vrot.slane %v51, %v55
  %v62 = vunpack.c.l.b16 %v15
  %v63 = vunpack.c.h.b16 %v15
  %v64 = vunpack.c.l.b16 %v16
  %v65 = vunpack.c.h.b16 %v16
  %v66 = vunpack.c.l.b16 %v17
  %v67 = vunpack.c.h.b16 %v17
  %v68 = vunpack.c.l.b16 %v18
  %v69 = vunpack.c.h.b16 %v18
  %v70 = vpack.c.b16 %v64, %v62
  %v71 = vpack.c.b16 %v65, %v63
  %v72 = vpack.c.b16 %v68, %v66
  %v73 = vpack.c.b16 %v69, %v67
  %v110 = vunpack.c.l.b16 %v19
  %v111 = vunpack.c.l.b16 %v20
  %v112 = vunpack.c.l.b16 %v21
  %v113 = vunpack.c.l.b16 %v22
  %v114 = vunpack.c.l.b16 %v23
  %v115 = vunpack.c.l.b16 %v24
  %v116 = vunpack.c.l.b16 %v25
  %v117 = vunpack.c.l.b16 %v26
  %v118 = vunpack.c.l.b16 %v27
  %v119 = vunpack.c.l.b16 %v28
  %v120 = vunpack.c.l.b16 %v29
  %v121 = vunpack.c.l.b16 %v30
  %v122 = vunpack.c.l.b16 %v31
  %v123 = vunpack.c.l.b16 %v32
  %v124 = vunpack.c.l.b16 %v33
  %v125 = vunpack.c.l.b16 %v34
  %v126 = vunpack.c.l.b16 %v35
  %v127 = vunpack.c.l.b16 %v36
  %v128 = vunpack.c.l.b16 %v37
  %v129 = vunpack.c.l.b16 %v38
  %v130 = vunpack.c.l.b16 %v39
  %v131 = vunpack.c.l.b16 %v40
  %v132 = vunpack.c.l.b16 %v41
  %v133 = vunpack.c.l.b16 %v42
  %v134 = vunpack.c.l.b16 %v43
  %v135 = vunpack.c.l.b16 %v44
  %v136 = vunpack.c.l.b16 %v45
  %v137 = vunpack.c.l.b16 %v46
  %v138 = vunpack.c.l.b16 %v47
  %v139 = vunpack.c.l.b16 %v48
  %v140 = vunpack.c.l.b16 %v49
  %v141 = vunpack.c.l.b16 %v50
  %v142 = vpack.c.b16 %v111, %v110
  %v143 = vpack.c.b16 %v113, %v112
  %v144 = vpack.c.b16 %v115, %v114
  %v145 = vpack.c.b16 %v117, %v116
  %v146 = vpack.c.b16 %v119, %v118
  %v147 = vpack.c.b16 %v121, %v120
  %v148 = vpack.c.b16 %v123, %v122
  %v149 = vpack.c.b16 %v125, %v124
  %v150 = vpack.c.b16 %v127, %v126
  %v151 = vpack.c.b16 %v129, %v128
  %v152 = vpack.c.b16 %v131, %v130
  %v153 = vpack.c.b16 %v133, %v132
  %v154 = vpack.c.b16 %v135, %v134
  %v155 = vpack.c.b16 %v137, %v136
  %v156 = vpack.c.b16 %v139, %v138
  %v157 = vpack.c.b16 %v141, %v140
  %174 = vmatprep.subr.bf16.mxu0 0
  %175 = vmatpush1.bf16.msra.mxu0 %v149
  %176 = vmatprep.subr.bf16.mxu0 0
  %177 = vmatpush1.bf16.msra.mxu0 %v148
  %178 = vmatprep.subr.bf16.mxu0 0
  %179 = vmatpush1.bf16.msra.mxu0 %v147
  %180 = vmatprep.subr.bf16.mxu0 0
  %181 = vmatpush1.bf16.msra.mxu0 %v146
  %182 = vmatprep.subr.bf16.mxu0 0
  %183 = vmatpush1.bf16.msra.mxu0 %v145
  %184 = vmatprep.subr.bf16.mxu0 0
  %185 = vmatpush1.bf16.msra.mxu0 %v144
  %186 = vmatprep.subr.bf16.mxu0 0
  %187 = vmatpush1.bf16.msra.mxu0 %v143
  %188 = vmatprep.subr.bf16.mxu0 0
  %189 = vmatpush1.bf16.msra.mxu0 %v142
  %190 = vmatprep.subr.bf16.mxu0 0
  %191 = vmatpush2.bf16.msra.mxu0 %v157
  %192 = vmatprep.subr.bf16.mxu0 0
  %193 = vmatpush2.bf16.msra.mxu0 %v156
  %194 = vmatprep.subr.bf16.mxu0 0
  %195 = vmatpush2.bf16.msra.mxu0 %v155
  %196 = vmatprep.subr.bf16.mxu0 0
  %197 = vmatpush2.bf16.msra.mxu0 %v154
  %198 = vmatprep.subr.bf16.mxu0 0
  %199 = vmatpush2.bf16.msra.mxu0 %v153
  %200 = vmatprep.subr.bf16.mxu0 0
  %201 = vmatpush2.bf16.msra.mxu0 %v152
  %202 = vmatprep.subr.bf16.mxu0 0
  %203 = vmatpush2.bf16.msra.mxu0 %v151
  %204 = vmatprep.subr.bf16.mxu0 0
  %205 = vmatpush2.bf16.msra.mxu0 %v150
  %206 = vmatprep.mubr.bf16.mxu0 %v71
  %207 = vmatmul.mubr.bf16.gmra.mxu0 %v70
  %v208 = vpop.f32.mrf.mxu0
  %v209 = vadd.f32 %v56, %v208
  %v210 = vpop.f32.mrf.mxu0
  %v211 = vpop.f32.mrf.mxu0
  %v212 = vadd.f32 %v56, %v211
  %v213 = vpop.f32.mrf.mxu0
  %214 = vmatprep.mubr.bf16.mxu0 %v73
  %215 = vmatmul.mubr.bf16.gmra.mxu0 %v72
  %v216 = vpop.f32.mrf.mxu0
  %v217 = vadd.f32 %v56, %v216
  %v218 = vpop.f32.mrf.mxu0
  %v219 = vpop.f32.mrf.mxu0
  %v220 = vadd.f32 %v56, %v219
  %v221 = vpop.f32.mrf.mxu0
  %222 = vdwg.mxu0
  %v223 = vmax.f32 %v209, 0.0
  %v224 = vmax.f32 %v212, 0.0
  %v225 = vmax.f32 %v217, 0.0
  %v226 = vmax.f32 %v220, 0.0
  %v227 = vpack.c.bf16 %v224, %v223
  %v228 = vpack.c.bf16 %v226, %v225
  %v231 = vunpack.c.l.b16 %v227
  %v232 = vunpack.c.h.b16 %v227
  %v233 = vunpack.c.l.b16 %v228
  %v234 = vunpack.c.h.b16 %v228
  %v235 = vpack.c.b16 %v231, %v231
  %v236 = vpack.c.b16 %v232, %v232
  %v237 = vpack.c.b16 %v233, %v233
  %v238 = vpack.c.b16 %v234, %v234
  %243 = vst [vmem:[%s3] sm:$0xf] %v235
  %244 = vst [vmem:[%s3 + $0x4] sm:$0xf] %v236
  %245 = vst [vmem:[%s3 + $0x8] sm:$0xf] %v237
  %246 = vst [vmem:[%s3 + $0xc] sm:$0xf] %v238
  // Predicated region
  $region14: #{osnet_reid_forward.9} parent=0 // pred_check
    _
  $region15: #{osnet_reid_forward.9} parent=0 // pred_check_branch
    %248 = sbr.rel (0) target = $region17
  $region16: #{osnet_reid_forward.9} parent=0 // pred_region
    _
  $region17: #{osnet_reid_forward.9} parent=0 // pred_fallthru
    _
  // Predicated region
  $region18: #{osnet_reid_forward.9} parent=0 // pred_check
    _
  $region19: #{osnet_reid_forward.9} parent=0 // pred_check_branch
    %250 = sbr.rel (0) target = $region21
  $region20: #{osnet_reid_forward.9} parent=0 // pred_region
    _
  $region21: #{osnet_reid_forward.9} parent=0 // pred_fallthru
    _

// kernel: osnet_reid_forward.10
$region0: #{osnet_reid_forward.10}
  #allocation0 [shape = 'u32[]', space=smem, size = 0x4, offset = 0x4, fixed_abs, tag = 'smem constant byte address 0x4 - core index']
  #allocation1 [shape = 'u32[144,128]{1,0:T(1,128)}', space=vmem, size = 0x12000, scoped, tag = 'internal scratch']
  %s0 = inlined_call_operand.vmem [shape: bf16[8,256], index: 0, kind: input, shape index: {}]
  %s1 = inlined_call_operand.vmem [shape: bf16[256,128], index: 1, kind: input, shape index: {}]
  %s2 = inlined_call_operand.vmem [shape: f32[1,128], index: 2, kind: input, shape index: {}]
  %s3 = inlined_call_operand.vmem [shape: bf16[8,128], index: 3, kind: output, shape index: {}]
  %s4 = sld [smem:[#allocation0]]
  $region22: #{osnet_reid_forward.10} parent=0
    _
  %s6 = ssub.s32 1, %s4
  %s7 = scalar_select 0, %s6, %s4
  // Predicated region
  $region2: #{osnet_reid_forward.10} parent=0 // pred_check
    _
  $region3: #{osnet_reid_forward.10} parent=0 // pred_check_branch
    %9 = sbr.rel (0) target = $region5
  $region4: #{osnet_reid_forward.10} parent=0 // pred_region
    _
  $region5: #{osnet_reid_forward.10} parent=0 // pred_fallthru
    _
  // Predicated region
  $region6: #{osnet_reid_forward.10} parent=0 // pred_check
    _
  $region7: #{osnet_reid_forward.10} parent=0 // pred_check_branch
    %11 = sbr.rel (0) target = $region9
  $region8: #{osnet_reid_forward.10} parent=0 // pred_region
    _
  $region9: #{osnet_reid_forward.10} parent=0 // pred_fallthru
    _
  // Predicated region
  $region10: #{osnet_reid_forward.10} parent=0 // pred_check
    _
  $region11: #{osnet_reid_forward.10} parent=0 // pred_check_branch
    %13 = sbr.rel (0) target = $region13
  $region12: #{osnet_reid_forward.10} parent=0 // pred_region
    _
  $region13: #{osnet_reid_forward.10} parent=0 // pred_fallthru
    _
  %v15 = vld [vmem:[%s0] sm:$0xff]
  %v16 = vld [vmem:[%s1] sm:$0xf]
  %v17 = vld [vmem:[%s1 + $0x4] sm:$0xf]
  %v18 = vld [vmem:[%s1 + $0x8] sm:$0xf]
  %v19 = vld [vmem:[%s1 + $0xc] sm:$0xf]
  %v20 = vld [vmem:[%s1 + $0x10] sm:$0xf]
  %v21 = vld [vmem:[%s1 + $0x14] sm:$0xf]
  %v22 = vld [vmem:[%s1 + $0x18] sm:$0xf]
  %v23 = vld [vmem:[%s1 + $0x1c] sm:$0xf]
  %v24 = vld [vmem:[%s1 + $0x20] sm:$0xf]
  %v25 = vld [vmem:[%s1 + $0x24] sm:$0xf]
  %v26 = vld [vmem:[%s1 + $0x28] sm:$0xf]
  %v27 = vld [vmem:[%s1 + $0x2c] sm:$0xf]
  %v28 = vld [vmem:[%s1 + $0x30] sm:$0xf]
  %v29 = vld [vmem:[%s1 + $0x34] sm:$0xf]
  %v30 = vld [vmem:[%s1 + $0x38] sm:$0xf]
  %v31 = vld [vmem:[%s1 + $0x3c] sm:$0xf]
  %v32 = vld [vmem:[%s1 + $0x40] sm:$0xf]
  %v33 = vld [vmem:[%s1 + $0x44] sm:$0xf]
  %v34 = vld [vmem:[%s1 + $0x48] sm:$0xf]
  %v35 = vld [vmem:[%s1 + $0x4c] sm:$0xf]
  %v36 = vld [vmem:[%s1 + $0x50] sm:$0xf]
  %v37 = vld [vmem:[%s1 + $0x54] sm:$0xf]
  %v38 = vld [vmem:[%s1 + $0x58] sm:$0xf]
  %v39 = vld [vmem:[%s1 + $0x5c] sm:$0xf]
  %v40 = vld [vmem:[%s1 + $0x60] sm:$0xf]
  %v41 = vld [vmem:[%s1 + $0x64] sm:$0xf]
  %v42 = vld [vmem:[%s1 + $0x68] sm:$0xf]
  %v43 = vld [vmem:[%s1 + $0x6c] sm:$0xf]
  %v44 = vld [vmem:[%s1 + $0x70] sm:$0xf]
  %v45 = vld [vmem:[%s1 + $0x74] sm:$0xf]
  %v46 = vld [vmem:[%s1 + $0x78] sm:$0xf]
  %v47 = vld [vmem:[%s1 + $0x7c] sm:$0xf]
  %v48 = vld [vmem:[%s2] sm:$0x1]
  %v50 = vlaneseq
  %v51 = vshrl.u32 %v50, 7
  %v52 = vsub.s32 0, %v51
  %v53 = vrot.slane %v48, %v52
  %v56 = vunpack.c.l.b16 %v15
  %v57 = vunpack.c.h.b16 %v15
  %v58 = vpack.c.b16 %v56, %v56
  %v59 = vpack.c.b16 %v57, %v57
  %v94 = vunpack.c.l.b16 %v16
  %v95 = vunpack.c.l.b16 %v17
  %v96 = vunpack.c.l.b16 %v18
  %v97 = vunpack.c.l.b16 %v19
  %v98 = vunpack.c.l.b16 %v20
  %v99 = vunpack.c.l.b16 %v21
  %v100 = vunpack.c.l.b16 %v22
  %v101 = vunpack.c.l.b16 %v23
  %v102 = vunpack.c.l.b16 %v24
  %v103 = vunpack.c.l.b16 %v25
  %v104 = vunpack.c.l.b16 %v26
  %v105 = vunpack.c.l.b16 %v27
  %v106 = vunpack.c.l.b16 %v28
  %v107 = vunpack.c.l.b16 %v29
  %v108 = vunpack.c.l.b16 %v30
  %v109 = vunpack.c.l.b16 %v31
  %v110 = vunpack.c.l.b16 %v32
  %v111 = vunpack.c.l.b16 %v33
  %v112 = vunpack.c.l.b16 %v34
  %v113 = vunpack.c.l.b16 %v35
  %v114 = vunpack.c.l.b16 %v36
  %v115 = vunpack.c.l.b16 %v37
  %v116 = vunpack.c.l.b16 %v38
  %v117 = vunpack.c.l.b16 %v39
  %v118 = vunpack.c.l.b16 %v40
  %v119 = vunpack.c.l.b16 %v41
  %v120 = vunpack.c.l.b16 %v42
  %v121 = vunpack.c.l.b16 %v43
  %v122 = vunpack.c.l.b16 %v44
  %v123 = vunpack.c.l.b16 %v45
  %v124 = vunpack.c.l.b16 %v46
  %v125 = vunpack.c.l.b16 %v47
  %v126 = vpack.c.b16 %v95, %v94
  %v127 = vpack.c.b16 %v97, %v96
  %v128 = vpack.c.b16 %v99, %v98
  %v129 = vpack.c.b16 %v101, %v100
  %v130 = vpack.c.b16 %v103, %v102
  %v131 = vpack.c.b16 %v105, %v104
  %v132 = vpack.c.b16 %v107, %v106
  %v133 = vpack.c.b16 %v109, %v108
  %v134 = vpack.c.b16 %v111, %v110
  %v135 = vpack.c.b16 %v113, %v112
  %v136 = vpack.c.b16 %v115, %v114
  %v137 = vpack.c.b16 %v117, %v116
  %v138 = vpack.c.b16 %v119, %v118
  %v139 = vpack.c.b16 %v121, %v120
  %v140 = vpack.c.b16 %v123, %v122
  %v141 = vpack.c.b16 %v125, %v124
  %158 = vmatprep.subr.bf16.mxu0 0
  %159 = vmatpush1.bf16.msra.mxu0 %v133
  %160 = vmatprep.subr.bf16.mxu0 0
  %161 = vmatpush1.bf16.msra.mxu0 %v132
  %162 = vmatprep.subr.bf16.mxu0 0
  %163 = vmatpush1.bf16.msra.mxu0 %v131
  %164 = vmatprep.subr.bf16.mxu0 0
  %165 = vmatpush1.bf16.msra.mxu0 %v130
  %166 = vmatprep.subr.bf16.mxu0 0
  %167 = vmatpush1.bf16.msra.mxu0 %v129
  %168 = vmatprep.subr.bf16.mxu0 0
  %169 = vmatpush1.bf16.msra.mxu0 %v128
  %170 = vmatprep.subr.bf16.mxu0 0
  %171 = vmatpush1.bf16.msra.mxu0 %v127
  %172 = vmatprep.subr.bf16.mxu0 0
  %173 = vmatpush1.bf16.msra.mxu0 %v126
  %174 = vmatprep.subr.bf16.mxu0 0
  %175 = vmatpush2.bf16.msra.mxu0 %v141
  %176 = vmatprep.subr.bf16.mxu0 0
  %177 = vmatpush2.bf16.msra.mxu0 %v140
  %178 = vmatprep.subr.bf16.mxu0 0
  %179 = vmatpush2.bf16.msra.mxu0 %v139
  %180 = vmatprep.subr.bf16.mxu0 0
  %181 = vmatpush2.bf16.msra.mxu0 %v138
  %182 = vmatprep.subr.bf16.mxu0 0
  %183 = vmatpush2.bf16.msra.mxu0 %v137
  %184 = vmatprep.subr.bf16.mxu0 0
  %185 = vmatpush2.bf16.msra.mxu0 %v136
  %186 = vmatprep.subr.bf16.mxu0 0
  %187 = vmatpush2.bf16.msra.mxu0 %v135
  %188 = vmatprep.subr.bf16.mxu0 0
  %189 = vmatpush2.bf16.msra.mxu0 %v134
  %190 = vmatprep.mubr.bf16.mxu0 %v59
  %191 = vmatmul.mubr.bf16.gmra.mxu0 %v58
  %v192 = vpop.f32.mrf.mxu0
  %v193 = vadd.f32 %v53, %v192
  %v194 = vpop.f32.mrf.mxu0
  %v195 = vpop.f32.mrf.mxu0
  %v196 = vpop.f32.mrf.mxu0
  %197 = vdwg.mxu0
  %v198 = vmax.f32 %v193, 0.0
  %v199 = vpack.c.bf16 %v198, %v198
  %200 = vst [vmem:[%s3] sm:$0xf] %v199
  // Predicated region
  $region14: #{osnet_reid_forward.10} parent=0 // pred_check
    _
  $region15: #{osnet_reid_forward.10} parent=0 // pred_check_branch
    %202 = sbr.rel (0) target = $region17
  $region16: #{osnet_reid_forward.10} parent=0 // pred_region
    _
  $region17: #{osnet_reid_forward.10} parent=0 // pred_fallthru
    _
  // Predicated region
  $region18: #{osnet_reid_forward.10} parent=0 // pred_check
    _
  $region19: #{osnet_reid_forward.10} parent=0 // pred_check_branch
    %204 = sbr.rel (0) target = $region21
  $region20: #{osnet_reid_forward.10} parent=0 // pred_region
    _
  $region21: #{osnet_reid_forward.10} parent=0 // pred_fallthru
    _

// kernel: osnet_reid_forward.11
$region0: #{osnet_reid_forward.11}
  #allocation0 [shape = 'u32[]', space=smem, size = 0x4, offset = 0x4, fixed_abs, tag = 'smem constant byte address 0x4 - core index']
  #allocation1 [shape = 'u32[144,128]{1,0:T(1,128)}', space=vmem, size = 0x12000, scoped, tag = 'internal scratch']
  %s0 = inlined_call_operand.vmem [shape: bf16[8,128], index: 0, kind: input, shape index: {}]
  %s1 = inlined_call_operand.vmem [shape: bf16[128,128], index: 1, kind: input, shape index: {}]
  %s2 = inlined_call_operand.vmem [shape: f32[1,128], index: 2, kind: input, shape index: {}]
  %s3 = inlined_call_operand.vmem [shape: f32[2,8], index: 3, kind: input, shape index: {}]
  %s4 = inlined_call_operand.vmem [shape: f32[128,128], index: 4, kind: input, shape index: {}]
  %s5 = inlined_call_operand.vmem [shape: f32[1,128], index: 5, kind: input, shape index: {}]
  %s6 = inlined_call_operand.hbm [shape: f32[2,128], index: 6, kind: output, shape index: {}]
  %s7 = sld [smem:[#allocation0]]
  $region34: #{osnet_reid_forward.11} parent=0
    _
  %s9 = ssub.s32 1, %s7
  %s10 = scalar_select 0, %s9, %s7
  $region1: #{osnet_reid_forward.11} parent=0
    #allocation2 [shape = 'u8[1024]{0}', space=vmem, size = 0x400, scoped, tag = 'output window, operand 0, single buffered']
    #allocation3 [shape = 's32[1]{0}', space=sflag, size = 0x4, scoped, tag = 'scoped memory for osnet_reid_forward.11']
    %11 = vsyncpa [#allocation3], 0
    // Predicated region
    $region2: #{osnet_reid_forward.11} parent=1 // pred_check
      _
    $region3: #{osnet_reid_forward.11} parent=1 // pred_check_branch
      %13 = sbr.rel (0) target = $region5
    $region4: #{osnet_reid_forward.11} parent=1 // pred_region
      _
    $region5: #{osnet_reid_forward.11} parent=1 // pred_fallthru
      _
    // Predicated region
    $region6: #{osnet_reid_forward.11} parent=1 // pred_check
      _
    $region7: #{osnet_reid_forward.11} parent=1 // pred_check_branch
      %15 = sbr.rel (0) target = $region9
    $region8: #{osnet_reid_forward.11} parent=1 // pred_region
      _
    $region9: #{osnet_reid_forward.11} parent=1 // pred_fallthru
      _
    // Predicated region
    $region10: #{osnet_reid_forward.11} parent=1 // pred_check
      _
    $region11: #{osnet_reid_forward.11} parent=1 // pred_check_branch
      %17 = sbr.rel (0) target = $region13
    $region12: #{osnet_reid_forward.11} parent=1 // pred_region
      _
    $region13: #{osnet_reid_forward.11} parent=1 // pred_fallthru
      _
    // Predicated region
    $region14: #{osnet_reid_forward.11} parent=1 // pred_check
      _
    $region15: #{osnet_reid_forward.11} parent=1 // pred_check_branch
      %19 = sbr.rel (0) target = $region17
    $region16: #{osnet_reid_forward.11} parent=1 // pred_region
      _
    $region17: #{osnet_reid_forward.11} parent=1 // pred_fallthru
      _
    // Predicated region
    $region18: #{osnet_reid_forward.11} parent=1 // pred_check
      _
    $region19: #{osnet_reid_forward.11} parent=1 // pred_check_branch
      %21 = sbr.rel (0) target = $region21
    $region20: #{osnet_reid_forward.11} parent=1 // pred_region
      _
    $region21: #{osnet_reid_forward.11} parent=1 // pred_fallthru
      _
    // Predicated region
    $region22: #{osnet_reid_forward.11} parent=1 // pred_check
      _
    $region23: #{osnet_reid_forward.11} parent=1 // pred_check_branch
      %23 = sbr.rel (0) target = $region25
    $region24: #{osnet_reid_forward.11} parent=1 // pred_region
      _
    $region25: #{osnet_reid_forward.11} parent=1 // pred_fallthru
      _
    %v25 = vld [vmem:[%s0] sm:$0xf]
    %v26 = vld [vmem:[%s1] sm:$0xf]
    %v27 = vld [vmem:[%s1 + $0x4] sm:$0xf]
    %v28 = vld [vmem:[%s1 + $0x8] sm:$0xf]
    %v29 = vld [vmem:[%s1 + $0xc] sm:$0xf]
    %v30 = vld [vmem:[%s1 + $0x10] sm:$0xf]
    %v31 = vld [vmem:[%s1 + $0x14] sm:$0xf]
    %v32 = vld [vmem:[%s1 + $0x18] sm:$0xf]
    %v33 = vld [vmem:[%s1 + $0x1c] sm:$0xf]
    %v34 = vld [vmem:[%s1 + $0x20] sm:$0xf]
    %v35 = vld [vmem:[%s1 + $0x24] sm:$0xf]
    %v36 = vld [vmem:[%s1 + $0x28] sm:$0xf]
    %v37 = vld [vmem:[%s1 + $0x2c] sm:$0xf]
    %v38 = vld [vmem:[%s1 + $0x30] sm:$0xf]
    %v39 = vld [vmem:[%s1 + $0x34] sm:$0xf]
    %v40 = vld [vmem:[%s1 + $0x38] sm:$0xf]
    %v41 = vld [vmem:[%s1 + $0x3c] sm:$0xf]
    %v42 = vld [vmem:[%s2] sm:$0x1]
    %v44 = vlaneseq
    %v45 = vshrl.u32 %v44, 7
    %v46 = vsub.s32 0, %v45
    %v47 = vrot.slane %v42, %v46
    %v65 = vunpack.c.l.b16 %v26
    %v66 = vunpack.c.l.b16 %v27
    %v67 = vunpack.c.l.b16 %v28
    %v68 = vunpack.c.l.b16 %v29
    %v69 = vunpack.c.l.b16 %v30
    %v70 = vunpack.c.l.b16 %v31
    %v71 = vunpack.c.l.b16 %v32
    %v72 = vunpack.c.l.b16 %v33
    %v73 = vunpack.c.l.b16 %v34
    %v74 = vunpack.c.l.b16 %v35
    %v75 = vunpack.c.l.b16 %v36
    %v76 = vunpack.c.l.b16 %v37
    %v77 = vunpack.c.l.b16 %v38
    %v78 = vunpack.c.l.b16 %v39
    %v79 = vunpack.c.l.b16 %v40
    %v80 = vunpack.c.l.b16 %v41
    %v81 = vpack.c.b16 %v66, %v65
    %v82 = vpack.c.b16 %v68, %v67
    %v83 = vpack.c.b16 %v70, %v69
    %v84 = vpack.c.b16 %v72, %v71
    %v85 = vpack.c.b16 %v74, %v73
    %v86 = vpack.c.b16 %v76, %v75
    %v87 = vpack.c.b16 %v78, %v77
    %v88 = vpack.c.b16 %v80, %v79
    %97 = vmatprep.subr.bf16.mxu0 0
    %98 = vmatpush1.bf16.msra.mxu0 %v88
    %99 = vmatprep.subr.bf16.mxu0 0
    %100 = vmatpush1.bf16.msra.mxu0 %v87
    %101 = vmatprep.subr.bf16.mxu0 0
    %102 = vmatpush1.bf16.msra.mxu0 %v86
    %103 = vmatprep.subr.bf16.mxu0 0
    %104 = vmatpush1.bf16.msra.mxu0 %v85
    %105 = vmatprep.subr.bf16.mxu0 0
    %106 = vmatpush1.bf16.msra.mxu0 %v84
    %107 = vmatprep.subr.bf16.mxu0 0
    %108 = vmatpush1.bf16.msra.mxu0 %v83
    %109 = vmatprep.subr.bf16.mxu0 0
    %110 = vmatpush1.bf16.msra.mxu0 %v82
    %111 = vmatprep.subr.bf16.mxu0 0
    %112 = vmatpush1.bf16.msra.mxu0 %v81
    %113 = vmatprep.subr.bf16.mxu0 0
    %114 = vmatpush2.bf16.msra.mxu0 0
    %115 = vmatprep.subr.bf16.mxu0 0
    %116 = vmatpush2.bf16.msra.mxu0 0
    %117 = vmatprep.subr.bf16.mxu0 0
    %118 = vmatpush2.bf16.msra.mxu0 0
    %119 = vmatprep.subr.bf16.mxu0 0
    %120 = vmatpush2.bf16.msra.mxu0 0
    %121 = vmatprep.subr.bf16.mxu0 0
    %122 = vmatpush2.bf16.msra.mxu0 0
    %123 = vmatprep.subr.bf16.mxu0 0
    %124 = vmatpush2.bf16.msra.mxu0 0
    %125 = vmatprep.subr.bf16.mxu0 0
    %126 = vmatpush2.bf16.msra.mxu0 0
    %127 = vmatprep.subr.bf16.mxu0 0
    %128 = vmatpush2.bf16.msra.mxu0 0
    %129 = vmatprep.mubr.bf16.mxu0 0
    %130 = vmatmul.mubr.bf16.gmra.mxu0 %v25
    %v131 = vpop.f32.mrf.mxu0
    %v132 = vadd.f32 %v47, %v131
    %v133 = vpop.f32.mrf.mxu0
    %v134 = vpop.f32.mrf.mxu0
    %v135 = vpop.f32.mrf.mxu0
    %136 = vdwg.mxu0
    %v137 = vmax.f32 %v132, 0.0
    %v138 = vld [vmem:[%s3] sm:$0x3]
    %vm139 = vcmask 64512
    %v141 = vsel %vm139, %v138, 0
    %143 = vmatprep.subr.mxu0 0.0
    %144 = vmatpush1.msra.mxu0 0.0
    %145 = vmatprep.subr.mxu0 0.0
    %146 = vmatpush1.msra.mxu0 0.0
    %147 = vmatprep.subr.mxu0 0.0
    %148 = vmatpush1.msra.mxu0 0.0
    %149 = vmatprep.subr.mxu0 0.0
    %150 = vmatpush1.msra.mxu0 0.0
    %151 = vmatprep.subr.mxu0 0.0
    %152 = vmatpush1.msra.mxu0 0.0
    %153 = vmatprep.subr.mxu0 0.0
    %154 = vmatpush1.msra.mxu0 0.0
    %155 = vmatprep.subr.mxu0 0.0
    %156 = vmatpush1.msra.mxu0 0.0
    %157 = vmatprep.subr.mxu0 0.0
    %158 = vmatpush1.msra.mxu0 0.0
    %159 = vmatprep.subr.mxu0 0.0
    %160 = vmatpush1.msra.mxu0 0.0
    %161 = vmatprep.subr.mxu0 0.0
    %162 = vmatpush1.msra.mxu0 0.0
    %163 = vmatprep.subr.mxu0 0.0
    %164 = vmatpush1.msra.mxu0 0.0
    %165 = vmatprep.subr.mxu0 0.0
    %166 = vmatpush1.msra.mxu0 0.0
    %167 = vmatprep.subr.mxu0 0.0
    %168 = vmatpush1.msra.mxu0 0.0
    %169 = vmatprep.subr.mxu0 0.0
    %170 = vmatpush1.msra.mxu0 0.0
    %171 = vmatprep.subr.mxu0 0.0
    %172 = vmatpush1.msra.mxu0 0.0
    %173 = vmatprep.subr.mxu0 0.0
    %174 = vmatpush1.msra.mxu0 %v137
    %175 = vmatprep.subr.mxu0 0.0
    %176 = vmatpush2.msra.mxu0 0.0
    %177 = vmatprep.subr.mxu0 0.0
    %178 = vmatpush2.msra.mxu0 0.0
    %179 = vmatprep.subr.mxu0 0.0
    %180 = vmatpush2.msra.mxu0 0.0
    %181 = vmatprep.subr.mxu0 0.0
    %182 = vmatpush2.msra.mxu0 0.0
    %183 = vmatprep.subr.mxu0 0.0
    %184 = vmatpush2.msra.mxu0 0.0
    %185 = vmatprep.subr.mxu0 0.0
    %186 = vmatpush2.msra.mxu0 0.0
    %187 = vmatprep.subr.mxu0 0.0
    %188 = vmatpush2.msra.mxu0 0.0
    %189 = vmatprep.subr.mxu0 0.0
    %190 = vmatpush2.msra.mxu0 0.0
    %191 = vmatprep.subr.mxu0 0.0
    %192 = vmatpush2.msra.mxu0 0.0
    %193 = vmatprep.subr.mxu0 0.0
    %194 = vmatpush2.msra.mxu0 0.0
    %195 = vmatprep.subr.mxu0 0.0
    %196 = vmatpush2.msra.mxu0 0.0
    %197 = vmatprep.subr.mxu0 0.0
    %198 = vmatpush2.msra.mxu0 0.0
    %199 = vmatprep.subr.mxu0 0.0
    %200 = vmatpush2.msra.mxu0 0.0
    %201 = vmatprep.subr.mxu0 0.0
    %202 = vmatpush2.msra.mxu0 0.0
    %203 = vmatprep.subr.mxu0 0.0
    %204 = vmatpush2.msra.mxu0 0.0
    %205 = vmatprep.subr.mxu0 0.0
    %206 = vmatpush2.msra.mxu0 0.0
    %207 = vmatprep.mubr.f32.mxu0 0.0
    %208 = vmatmul.mubr.f32.gmra.mxu0 %v141
    %v209 = vpop.f32.mrf.mxu0
    %v210 = vadd.f32 0.0, %v209
    %v211 = vpop.f32.mrf.mxu0
    %212 = vdwg.mxu0
    %v213 = vld [vmem:[%s4] sm:$0xff]
    %v214 = vld [vmem:[%s4 + $0x8] sm:$0xff]
    %v215 = vld [vmem:[%s4 + $0x10] sm:$0xff]
    %v216 = vld [vmem:[%s4 + $0x18] sm:$0xff]
    %v217 = vld [vmem:[%s4 + $0x20] sm:$0xff]
    %v218 = vld [vmem:[%s4 + $0x28] sm:$0xff]
    %v219 = vld [vmem:[%s4 + $0x30] sm:$0xff]
    %v220 = vld [vmem:[%s4 + $0x38] sm:$0xff]
    %v221 = vld [vmem:[%s4 + $0x40] sm:$0xff]
    %v222 = vld [vmem:[%s4 + $0x48] sm:$0xff]
    %v223 = vld [vmem:[%s4 + $0x50] sm:$0xff]
    %v224 = vld [vmem:[%s4 + $0x58] sm:$0xff]
    %v225 = vld [vmem:[%s4 + $0x60] sm:$0xff]
    %v226 = vld [vmem:[%s4 + $0x68] sm:$0xff]
    %v227 = vld [vmem:[%s4 + $0x70] sm:$0xff]
    %v228 = vld [vmem:[%s4 + $0x78] sm:$0xff]
    %v229 = vld [vmem:[%s5] sm:$0x1]
    %v231 = vlaneseq
    %v232 = vshrl.u32 %v231, 7
    %v233 = vsub.s32 0, %v232
    %v234 = vrot.slane %v229, %v233
    %236 = vmatprep.subr.mxu0 0.0
    %237 = vmatpush1.msra.mxu0 %v228
    %238 = vmatprep.subr.mxu0 0.0
    %239 = vmatpush1.msra.mxu0 %v227
    %240 = vmatprep.subr.mxu0 0.0
    %241 = vmatpush1.msra.mxu0 %v226
    %242 = vmatprep.subr.mxu0 0.0
    %243 = vmatpush1.msra.mxu0 %v225
    %244 = vmatprep.subr.mxu0 0.0
    %245 = vmatpush1.msra.mxu0 %v224
    %246 = vmatprep.subr.mxu0 0.0
    %247 = vmatpush1.msra.mxu0 %v223
    %248 = vmatprep.subr.mxu0 0.0
    %249 = vmatpush1.msra.mxu0 %v222
    %250 = vmatprep.subr.mxu0 0.0
    %251 = vmatpush1.msra.mxu0 %v221
    %252 = vmatprep.subr.mxu0 0.0
    %253 = vmatpush1.msra.mxu0 %v220
    %254 = vmatprep.subr.mxu0 0.0
    %255 = vmatpush1.msra.mxu0 %v219
    %256 = vmatprep.subr.mxu0 0.0
    %257 = vmatpush1.msra.mxu0 %v218
    %258 = vmatprep.subr.mxu0 0.0
    %259 = vmatpush1.msra.mxu0 %v217
    %260 = vmatprep.subr.mxu0 0.0
    %261 = vmatpush1.msra.mxu0 %v216
    %262 = vmatprep.subr.mxu0 0.0
    %263 = vmatpush1.msra.mxu0 %v215
    %264 = vmatprep.subr.mxu0 0.0
    %265 = vmatpush1.msra.mxu0 %v214
    %266 = vmatprep.subr.mxu0 0.0
    %267 = vmatpush1.msra.mxu0 %v213
    %268 = vmatprep.subr.mxu0 0.0
    %269 = vmatpush2.msra.mxu0 0.0
    %270 = vmatprep.subr.mxu0 0.0
    %271 = vmatpush2.msra.mxu0 0.0
    %272 = vmatprep.subr.mxu0 0.0
    %273 = vmatpush2.msra.mxu0 0.0
    %274 = vmatprep.subr.mxu0 0.0
    %275 = vmatpush2.msra.mxu0 0.0
    %276 = vmatprep.subr.mxu0 0.0
    %277 = vmatpush2.msra.mxu0 0.0
    %278 = vmatprep.subr.mxu0 0.0
    %279 = vmatpush2.msra.mxu0 0.0
    %280 = vmatprep.subr.mxu0 0.0
    %281 = vmatpush2.msra.mxu0 0.0
    %282 = vmatprep.subr.mxu0 0.0
    %283 = vmatpush2.msra.mxu0 0.0
    %284 = vmatprep.subr.mxu0 0.0
    %285 = vmatpush2.msra.mxu0 0.0
    %286 = vmatprep.subr.mxu0 0.0
    %287 = vmatpush2.msra.mxu0 0.0
    %288 = vmatprep.subr.mxu0 0.0
    %289 = vmatpush2.msra.mxu0 0.0
    %290 = vmatprep.subr.mxu0 0.0
    %291 = vmatpush2.msra.mxu0 0.0
    %292 = vmatprep.subr.mxu0 0.0
    %293 = vmatpush2.msra.mxu0 0.0
    %294 = vmatprep.subr.mxu0 0.0
    %295 = vmatpush2.msra.mxu0 0.0
    %296 = vmatprep.subr.mxu0 0.0
    %297 = vmatpush2.msra.mxu0 0.0
    %298 = vmatprep.subr.mxu0 0.0
    %299 = vmatpush2.msra.mxu0 0.0
    %300 = vmatprep.mubr.f32.mxu0 0.0
    %301 = vmatmul.mubr.f32.gmra.mxu0 %v210
    %v302 = vpop.f32.mrf.mxu0
    %v303 = vadd.f32 %v234, %v302
    %v304 = vpop.f32.mrf.mxu0
    %305 = vdwg.mxu0
    %306 = vst [vmem:[#allocation2] sm:$0x3] %v303
    // Predicated region
    $region26: #{osnet_reid_forward.11} parent=1 // pred_check
      _
    $region27: #{osnet_reid_forward.11} parent=1 // pred_check_branch
      %308 = sbr.rel (0) target = $region29
    $region28: #{osnet_reid_forward.11} parent=1 // pred_region
      %s310 = ssub.s32 32, 32
      %311 = vsyncadd [#allocation3], %s310
      %s313 = sshll.u32 [#allocation2], 4
      %s314 = int_to_ptr.vmem [resolvable:$true] %s313
      %316 = dma.vmem_to_hbm [thread:$0]  %s314, 32, %s6, [#allocation3]
    $region29: #{osnet_reid_forward.11} parent=1 // pred_fallthru
      _
    // Predicated region
    $region30: #{osnet_reid_forward.11} parent=1 // pred_check
      _
    $region31: #{osnet_reid_forward.11} parent=1 // pred_check_branch
      %318 = sbr.rel (0) target = $region33
    $region32: #{osnet_reid_forward.11} parent=1 // pred_region
      %319 = dma.done [#allocation3], 32
    $region33: #{osnet_reid_forward.11} parent=1 // pred_fallthru
      _
    %320 = vsyncpa [#allocation3], 1

</llo_original>
